<compile_context>
chip_gen: v7x
topology: tpu7x:2x2x1
jax: 0.10.0
libtpu: 0.0.40
codegen_flags: <defaults>
</compile_context>

<pallas_src>
import numpy as np

import jax
import jax.numpy as jnp
from jax.experimental import pallas as pl
from jax.experimental.pallas import tpu as pltpu


# ----------------------------- Pallas kernel -------------------------------- #
def _cnn2_kernel(x_ref, a1_ref, b1_ref, p1_ref, b2_ref, se1_ref, so1_ref,
                 a2_ref, b3_ref, p2_ref, b4_ref, se2_ref, so2_ref,
                 e_ref, wl_ref, blin_ref, o_ref):
    f32 = jnp.float32

    def mm(a, b):
        return jnp.dot(a, b, preferred_element_type=f32)

    x = x_ref[...]                     # (B*H, W) rows=(b,h), lanes=w
    r0 = x.shape[0]

    # conv1 (3x3, stride (1,2)) + folded BN1 + ReLU -------------------------
    r1 = r0 - 2
    y = (mm(x[0:r1, :], a1_ref[0]) +
         mm(x[1:r1 + 1, :], a1_ref[1]) +
         mm(x[2:r1 + 2, :], a1_ref[2]))
    y = jnp.maximum(y + b1_ref[...], 0.0)                  # lanes = (c1, W1)

    # pointwise1 (1x1) + folded BN2 + ReLU ----------------------------------
    y = jnp.maximum(mm(y, p1_ref[...]) + b2_ref[...], 0.0)  # lanes = (c2, W1)

    # maxpool 2x2: column pairs via selection matmuls, row pairs via shift --
    cm = jnp.maximum(mm(y, se1_ref[...]), mm(y, so1_ref[...]))
    r2 = r1 - 1
    y = jnp.maximum(cm[0:r2, :], cm[1:r2 + 1, :])           # row stride -> 2

    # depthwise conv2 (3x3, stride (1,2)) + folded BN3 + ReLU ---------------
    r3 = r2 - 4
    y = (mm(y[0:r3, :], a2_ref[0]) +
         mm(y[2:r3 + 2, :], a2_ref[1]) +
         mm(y[4:r3 + 4, :], a2_ref[2]))
    y = jnp.maximum(y + b3_ref[...], 0.0)                   # lanes = (c3, W3)

    # pointwise2 (1x1) + folded BN4 + ReLU ----------------------------------
    y = jnp.maximum(mm(y, p2_ref[...]) + b4_ref[...], 0.0)  # lanes = (c4, W3)

    # maxpool 2x2 -----------------------------------------------------------
    cm = jnp.maximum(mm(y, se2_ref[...]), mm(y, so2_ref[...]))
    r4 = r3 - 2
    y = jnp.maximum(cm[0:r4, :], cm[2:r4 + 2, :])           # row stride -> 4

    # linear head: gather the H4 valid rows of every sample with one matmul,
    # then H4 small (B, feat_c) x (feat_c, Kpad) matmuls.
    f = mm(e_ref[...], y)                                   # (H4*B, C4*W4)
    n_head = wl_ref.shape[0]
    bblk = o_ref.shape[0]
    logits = blin_ref[...]
    for h in range(n_head):
        logits = logits + mm(f[h * bblk:(h + 1) * bblk, :], wl_ref[h])
    o_ref[...] = logits


# ----------------------------- glue / wrapper ------------------------------- #
def _geometry(H, W):
    H1, W1 = H - 2, (W - 3) // 2 + 1         # conv1: 3x3, stride (1, 2), VALID
    Hp1, Wp1 = H1 // 2, W1 // 2              # maxpool 2x2
    H3, W3 = Hp1 - 2, (Wp1 - 3) // 2 + 1     # conv2: 3x3, stride (1, 2), VALID
    H4, W4 = H3 // 2, W3 // 2                # maxpool 2x2
    return H1, W1, Hp1, Wp1, H3, W3, H4, W4


def _conv_tap_idx(Win, Wout, Cin, Cout, depthwise):
    """Index/mask tables mapping folded conv weights into 3 (Lin, Lout) tap mats."""
    Lin, Lout = Cin * Win, Cout * Wout
    idx = np.zeros((3, Lin, Lout), np.int32)
    mask = np.zeros((3, Lin, Lout), np.float32)
    for kh in range(3):
        for oc in range(Cout):
            ics = (oc,) if depthwise else tuple(range(Cin))
            for wslot, ic in enumerate(ics):
                for wo in range(Wout):
                    for kw in range(3):
                        w = 2 * wo + kw
                        if w >= Win:
                            continue
                        row = ic * Win + w
                        col = oc * Wout + wo
                        idx[kh, row, col] = (oc * len(ics) + wslot) * 9 + kh * 3 + kw
                        mask[kh, row, col] = 1.0
    return idx, mask


def _pw_idx(Win, Cin, Cout):
    Lin, Lout = Cin * Win, Cout * Win
    idx = np.zeros((Lin, Lout), np.int32)
    mask = np.zeros((Lin, Lout), np.float32)
    for oc in range(Cout):
        for ic in range(Cin):
            for w in range(Win):
                idx[ic * Win + w, oc * Win + w] = oc * Cin + ic
                mask[ic * Win + w, oc * Win + w] = 1.0
    return idx, mask


def _pool_cols(Win, C):
    Wout = Win // 2
    se = np.zeros((C * Win, C * Wout), np.float32)
    so = np.zeros((C * Win, C * Wout), np.float32)
    for c in range(C):
        for wp in range(Wout):
            se[c * Win + 2 * wp, c * Wout + wp] = 1.0
            so[c * Win + 2 * wp + 1, c * Wout + wp] = 1.0
    return se, so


def cnn2_forward(x, params):
    N, Cin, H, W = x.shape
    assert Cin == 1
    eps = 1e-5
    H1, W1, Hp1, Wp1, H3, W3, H4, W4 = _geometry(H, W)
    assert H1 > 0 and W1 > 0 and H3 > 0 and W3 >= 2 and H4 >= 1 and W4 >= 1
    assert H >= 4 * H4 + 6, "row-slack condition for the fixed-period layout"

    def fold(w, bn):  # fold eval-mode BatchNorm into the preceding conv
        g, b, m, v = bn
        s = g / jnp.sqrt(v + eps)
        return w * s[:, None, None, None], (b - m * s)

    w1e, b1 = fold(params["w1"], params["bn1"])       # (C1,1,3,3), (C1,)
    wp1e, b2 = fold(params["wp1"], params["bn2"])     # (C2,C1,1,1), (C2,)
    wd2e, b3 = fold(params["wdw2"], params["bn3"])    # (C3,1,3,3), (C3,)
    wp2e, b4 = fold(params["wp2"], params["bn4"])     # (C4,C3,1,1), (C4,)

    C1 = w1e.shape[0]
    C2 = wp1e.shape[0]
    C3 = wd2e.shape[0]
    C4 = wp2e.shape[0]
    assert C3 == C2  # depthwise

    # conv tap matrices (kw taps + stride-2 subsample + channel mix folded in)
    i1, m1 = _conv_tap_idx(W, W1, 1, C1, depthwise=False)
    A1 = jnp.take(w1e.reshape(-1), jnp.asarray(i1)) * jnp.asarray(m1)
    i2, m2 = _conv_tap_idx(Wp1, W3, C2, C3, depthwise=True)
    A2 = jnp.take(wd2e.reshape(-1), jnp.asarray(i2)) * jnp.asarray(m2)

    # pointwise matrices
    ip1, mp1 = _pw_idx(W1, C1, C2)
    P1 = jnp.take(wp1e[:, :, 0, 0].reshape(-1), jnp.asarray(ip1)) * jnp.asarray(mp1)
    ip2, mp2 = _pw_idx(W3, C3, C4)
    P2 = jnp.take(wp2e[:, :, 0, 0].reshape(-1), jnp.asarray(ip2)) * jnp.asarray(mp2)

    # pooling column selectors
    Se1, So1 = _pool_cols(W1, C2)
    Se2, So2 = _pool_cols(W3, C4)

    # bias lane rows (per output channel, repeated over width)
    b1l = jnp.repeat(b1, W1)[None, :]
    b2l = jnp.repeat(b2, W1)[None, :]
    b3l = jnp.repeat(b3, W3)[None, :]
    b4l = jnp.repeat(b4, W3)[None, :]

    # batch blocking
    B = N if N <= 128 else 128
    NB = -(-N // B)
    Npad = NB * B

    # row-gather matrix for the head (valid rows of sample b sit at H*b + 4*h3)
    R4 = H * B - 9
    E = np.zeros((H4 * B, R4), np.float32)
    for h3 in range(H4):
        for b in range(B):
            E[h3 * B + b, H * b + 4 * h3] = 1.0

    # linear head weights, split per h3 and padded to a lane-dense width
    wlin = params["wlin"]                             # (K, C4*H4*W4)
    K = wlin.shape[0]
    Kp = 128
    wl_r = wlin.reshape(K, C4, H4, W4)
    wl_t = jnp.transpose(wl_r, (2, 1, 3, 0)).reshape(H4, C4 * W4, K)
    wl_p = jnp.pad(wl_t, ((0, 0), (0, 0), (0, Kp - K)))
    blin_p = jnp.pad(params["blin"], (0, Kp - K))[None, :]

    # input slab: (Npad*H, W), rows = (sample, height)
    xr = x.astype(jnp.float32).reshape(N, H, W)
    if Npad != N:
        xr = jnp.pad(xr, ((0, Npad - N), (0, 0), (0, 0)))
    x2 = xr.reshape(Npad * H, W)

    Se1j, So1j = jnp.asarray(Se1), jnp.asarray(So1)
    Se2j, So2j = jnp.asarray(Se2), jnp.asarray(So2)
    Ej = jnp.asarray(E)

    out = pl.pallas_call(
        _cnn2_kernel,
        out_shape=jax.ShapeDtypeStruct((Npad, Kp), jnp.float32),
        grid=(NB,),
        in_specs=[
            pl.BlockSpec((B * H, W), lambda i: (i, 0)),            # x slab
            pl.BlockSpec(A1.shape, lambda i: (0, 0, 0)),           # conv1 taps
            pl.BlockSpec(b1l.shape, lambda i: (0, 0)),
            pl.BlockSpec(P1.shape, lambda i: (0, 0)),              # pointwise1
            pl.BlockSpec(b2l.shape, lambda i: (0, 0)),
            pl.BlockSpec(Se1j.shape, lambda i: (0, 0)),            # pool1 cols
            pl.BlockSpec(So1j.shape, lambda i: (0, 0)),
            pl.BlockSpec(A2.shape, lambda i: (0, 0, 0)),           # conv2 taps
            pl.BlockSpec(b3l.shape, lambda i: (0, 0)),
            pl.BlockSpec(P2.shape, lambda i: (0, 0)),              # pointwise2
            pl.BlockSpec(b4l.shape, lambda i: (0, 0)),
            pl.BlockSpec(Se2j.shape, lambda i: (0, 0)),            # pool2 cols
            pl.BlockSpec(So2j.shape, lambda i: (0, 0)),
            pl.BlockSpec(Ej.shape, lambda i: (0, 0)),              # head gather
            pl.BlockSpec(wl_p.shape, lambda i: (0, 0, 0)),         # head weights
            pl.BlockSpec(blin_p.shape, lambda i: (0, 0)),
        ],
        out_specs=pl.BlockSpec((B, Kp), lambda i: (i, 0)),
        compiler_params=pltpu.CompilerParams(
            dimension_semantics=("parallel",),
            vmem_limit_bytes=32 * 1024 * 1024),
    )(x2, A1, b1l, P1, b2l, Se1j, So1j, A2, b3l, P2, b4l, Se2j, So2j,
      Ej, wl_p, blin_p)
    return out[:N, :K]


# ----------------------- deterministic parameter init ----------------------- #
def init_params(key, H, W, num_classes):
    _, _, _, _, _, _, H4, W4 = _geometry(H, W)
    feat = 16 * H4 * W4                       # == linear_input_size in __init__
    ks = jax.random.split(key, 10)

    def bn_init(k, c):
        k1, k2, k3, k4 = jax.random.split(k, 4)
        gamma = 1.0 + 0.1 * jax.random.normal(k1, (c,))
        beta = 0.1 * jax.random.normal(k2, (c,))
        mean = 0.1 * jax.random.normal(k3, (c,))
        var = 1.0 + 0.1 * jnp.abs(jax.random.normal(k4, (c,)))
        return (gamma, beta, mean, var)

    p = {
        "w1": 0.3 * jax.random.normal(ks[0], (4, 1, 3, 3)),
        "wp1": 0.3 * jax.random.normal(ks[1], (8, 4, 1, 1)),
        "wdw2": 0.3 * jax.random.normal(ks[2], (8, 1, 3, 3)),
        "wp2": 0.3 * jax.random.normal(ks[3], (16, 8, 1, 1)),
        "bn1": bn_init(ks[4], 4),
        "bn2": bn_init(ks[5], 8),
        "bn3": bn_init(ks[6], 8),
        "bn4": bn_init(ks[7], 16),
        "wlin": 0.1 * jax.random.normal(ks[8], (num_classes, feat)),
        "blin": 0.1 * jax.random.normal(ks[9], (num_classes,)),
    }
    return jax.tree_util.tree_map(lambda a: a.astype(jnp.float32), p)


# ------------------------- pure-JAX reference check ------------------------- #
def reference_forward(x, params):
    dn = ("NCHW", "OIHW", "NCHW")
    hp = jax.lax.Precision.HIGHEST

    def bn(y, bnp):
        g, b, m, v = bnp
        inv = g / jnp.sqrt(v + 1e-5)
        return ((y - m[None, :, None, None]) * inv[None, :, None, None]
                + b[None, :, None, None])

    def pool(y):
        return jax.lax.reduce_window(y, -jnp.inf, jax.lax.max,
                                     (1, 1, 2, 2), (1, 1, 2, 2), "VALID")

    relu = jax.nn.relu
    y = jax.lax.conv_general_dilated(x, params["w1"], (1, 2), "VALID",
                                     dimension_numbers=dn, precision=hp)
    y = relu(bn(y, params["bn1"]))
    y = jax.lax.conv_general_dilated(y, params["wp1"], (1, 1), "VALID",
                                     dimension_numbers=dn, precision=hp)
    y = relu(bn(y, params["bn2"]))
    y = pool(y)
    y = jax.lax.conv_general_dilated(y, params["wdw2"], (1, 2), "VALID",
                                     dimension_numbers=dn,
                                     feature_group_count=8, precision=hp)
    y = relu(bn(y, params["bn3"]))
    y = jax.lax.conv_general_dilated(y, params["wp2"], (1, 1), "VALID",
                                     dimension_numbers=dn, precision=hp)
    y = relu(bn(y, params["bn4"]))
    y = pool(y)
    f = y.reshape(y.shape[0], -1)
    return jnp.dot(f, params["wlin"].T, precision=hp) + params["blin"][None, :]


if __name__ == "__main__":
    # spectrogram_height=16, spectrogram_width=32, output_class_number=10, batch=2
    H, W, K, N = 16, 32, 10, 2
    key = jax.random.PRNGKey(0)
    pkey, xkey = jax.random.split(key)
    params = init_params(pkey, H, W, K)
    x = jax.random.normal(xkey, (N, 1, H, W), dtype=jnp.float32)

    logits = jax.jit(cnn2_forward)(x, params)
    logits = jax.block_until_ready(logits)

    ref = jax.block_until_ready(reference_forward(x, params))
    assert logits.shape == (N, K), logits.shape
    if not jnp.allclose(logits, ref, atol=1e-2, rtol=1e-2):
        raise SystemExit(
            f"mismatch vs reference: max abs err = {float(jnp.max(jnp.abs(logits - ref)))}")
    print("KERNEL_OK")
</pallas_src>

<mosaic_0001>
module attributes {stable_mosaic.version = 11 : i64} {
  func.func @_cnn2_kernel(%arg0: i32, %arg1: memref<32x32xf32, #tpu.memory_space<vmem>>, %arg2: memref<3x32x60xf32, #tpu.memory_space<vmem>>, %arg3: memref<1x60xf32, #tpu.memory_space<vmem>>, %arg4: memref<60x120xf32, #tpu.memory_space<vmem>>, %arg5: memref<1x120xf32, #tpu.memory_space<vmem>>, %arg6: memref<120x56xf32, #tpu.memory_space<vmem>>, %arg7: memref<120x56xf32, #tpu.memory_space<vmem>>, %arg8: memref<3x56x24xf32, #tpu.memory_space<vmem>>, %arg9: memref<1x24xf32, #tpu.memory_space<vmem>>, %arg10: memref<24x48xf32, #tpu.memory_space<vmem>>, %arg11: memref<1x48xf32, #tpu.memory_space<vmem>>, %arg12: memref<48x16xf32, #tpu.memory_space<vmem>>, %arg13: memref<48x16xf32, #tpu.memory_space<vmem>>, %arg14: memref<4x23xf32, #tpu.memory_space<vmem>>, %arg15: memref<2x16x128xf32, #tpu.memory_space<vmem>>, %arg16: memref<1x128xf32, #tpu.memory_space<vmem>>, %arg17: memref<2x128xf32, #tpu.memory_space<vmem>>) attributes {dimension_semantics = [#tpu.dimension_semantics<parallel>], iteration_bounds = array<i64: 1>, scalar_prefetch = 0 : i64, scratch_operands = 0 : i64, tpu.core_type = #tpu.core_type<tc>, window_params = [{transform_indices = @transform_0, window_bounds = array<i64: 32, 32>}, {pipeline_mode = #tpu.pipeline_mode<synchronous>, transform_indices = @transform_1, window_bounds = array<i64: 3, 32, 60>}, {pipeline_mode = #tpu.pipeline_mode<synchronous>, transform_indices = @transform_2, window_bounds = array<i64: 1, 60>}, {pipeline_mode = #tpu.pipeline_mode<synchronous>, transform_indices = @transform_3, window_bounds = array<i64: 60, 120>}, {pipeline_mode = #tpu.pipeline_mode<synchronous>, transform_indices = @transform_4, window_bounds = array<i64: 1, 120>}, {pipeline_mode = #tpu.pipeline_mode<synchronous>, transform_indices = @transform_5, window_bounds = array<i64: 120, 56>}, {pipeline_mode = #tpu.pipeline_mode<synchronous>, transform_indices = @transform_6, window_bounds = array<i64: 120, 56>}, {pipeline_mode = #tpu.pipeline_mode<synchronous>, transform_indices = @transform_7, window_bounds = array<i64: 3, 56, 24>}, {pipeline_mode = #tpu.pipeline_mode<synchronous>, transform_indices = @transform_8, window_bounds = array<i64: 1, 24>}, {pipeline_mode = #tpu.pipeline_mode<synchronous>, transform_indices = @transform_9, window_bounds = array<i64: 24, 48>}, {pipeline_mode = #tpu.pipeline_mode<synchronous>, transform_indices = @transform_10, window_bounds = array<i64: 1, 48>}, {pipeline_mode = #tpu.pipeline_mode<synchronous>, transform_indices = @transform_11, window_bounds = array<i64: 48, 16>}, {pipeline_mode = #tpu.pipeline_mode<synchronous>, transform_indices = @transform_12, window_bounds = array<i64: 48, 16>}, {pipeline_mode = #tpu.pipeline_mode<synchronous>, transform_indices = @transform_13, window_bounds = array<i64: 4, 23>}, {pipeline_mode = #tpu.pipeline_mode<synchronous>, transform_indices = @transform_14, window_bounds = array<i64: 2, 16, 128>}, {pipeline_mode = #tpu.pipeline_mode<synchronous>, transform_indices = @transform_15, window_bounds = array<i64: 1, 128>}, {transform_indices = @transform_16, window_bounds = array<i64: 2, 128>}]} {
    %c0 = arith.constant 0 : index
    %c0_0 = arith.constant 0 : index
    %0 = vector.load %arg1[%c0, %c0_0] : memref<32x32xf32, #tpu.memory_space<vmem>>, vector<32x32xf32>
    %1 = vector.extract_strided_slice %0 {offsets = [0, 0], sizes = [30, 32], strides = [1, 1]} : vector<32x32xf32> to vector<30x32xf32>
    %c0_1 = arith.constant 0 : index
    %c0_2 = arith.constant 0 : index
    %c0_3 = arith.constant 0 : index
    %2 = vector.load %arg2[%c0_1, %c0_2, %c0_3] : memref<3x32x60xf32, #tpu.memory_space<vmem>>, vector<1x32x60xf32>
    %3 = vector.shape_cast %2 : vector<1x32x60xf32> to vector<32x60xf32>
    %cst = arith.constant dense<0.000000e+00> : vector<30x60xf32>
    %4 = tpu.matmul %1, %3, %cst {dimension_numbers = #tpu.dot_dimension_numbers<[1], [0], [0], [1], [0, 0, 1, 1], [], []>} : vector<30x32xf32>, vector<32x60xf32>, vector<30x60xf32> -> vector<30x60xf32>
    %5 = vector.extract_strided_slice %0 {offsets = [1, 0], sizes = [30, 32], strides = [1, 1]} : vector<32x32xf32> to vector<30x32xf32>
    %c1 = arith.constant 1 : index
    %c0_4 = arith.constant 0 : index
    %c0_5 = arith.constant 0 : index
    %6 = vector.load %arg2[%c1, %c0_4, %c0_5] : memref<3x32x60xf32, #tpu.memory_space<vmem>>, vector<1x32x60xf32>
    %7 = vector.shape_cast %6 : vector<1x32x60xf32> to vector<32x60xf32>
    %cst_6 = arith.constant dense<0.000000e+00> : vector<30x60xf32>
    %8 = tpu.matmul %5, %7, %cst_6 {dimension_numbers = #tpu.dot_dimension_numbers<[1], [0], [0], [1], [0, 0, 1, 1], [], []>} : vector<30x32xf32>, vector<32x60xf32>, vector<30x60xf32> -> vector<30x60xf32>
    %9 = arith.addf %4, %8 : vector<30x60xf32>
    %10 = vector.extract_strided_slice %0 {offsets = [2, 0], sizes = [30, 32], strides = [1, 1]} : vector<32x32xf32> to vector<30x32xf32>
    %c2 = arith.constant 2 : index
    %c0_7 = arith.constant 0 : index
    %c0_8 = arith.constant 0 : index
    %11 = vector.load %arg2[%c2, %c0_7, %c0_8] : memref<3x32x60xf32, #tpu.memory_space<vmem>>, vector<1x32x60xf32>
    %12 = vector.shape_cast %11 : vector<1x32x60xf32> to vector<32x60xf32>
    %cst_9 = arith.constant dense<0.000000e+00> : vector<30x60xf32>
    %13 = tpu.matmul %10, %12, %cst_9 {dimension_numbers = #tpu.dot_dimension_numbers<[1], [0], [0], [1], [0, 0, 1, 1], [], []>} : vector<30x32xf32>, vector<32x60xf32>, vector<30x60xf32> -> vector<30x60xf32>
    %14 = arith.addf %9, %13 : vector<30x60xf32>
    %c0_10 = arith.constant 0 : index
    %c0_11 = arith.constant 0 : index
    %15 = vector.load %arg3[%c0_10, %c0_11] : memref<1x60xf32, #tpu.memory_space<vmem>>, vector<1x60xf32>
    %16 = vector.broadcast %15 : vector<1x60xf32> to vector<30x60xf32>
    %17 = arith.addf %14, %16 : vector<30x60xf32>
    %cst_12 = arith.constant 0.000000e+00 : f32
    %18 = vector.broadcast %cst_12 : f32 to vector<30x60xf32>
    %19 = arith.maximumf %17, %18 : vector<30x60xf32>
    %c0_13 = arith.constant 0 : index
    %c0_14 = arith.constant 0 : index
    %20 = vector.load %arg4[%c0_13, %c0_14] : memref<60x120xf32, #tpu.memory_space<vmem>>, vector<60x120xf32>
    %cst_15 = arith.constant dense<0.000000e+00> : vector<30x120xf32>
    %21 = tpu.matmul %19, %20, %cst_15 {dimension_numbers = #tpu.dot_dimension_numbers<[1], [0], [0], [1], [0, 0, 1, 1], [], []>} : vector<30x60xf32>, vector<60x120xf32>, vector<30x120xf32> -> vector<30x120xf32>
    %c0_16 = arith.constant 0 : index
    %c0_17 = arith.constant 0 : index
    %22 = vector.load %arg5[%c0_16, %c0_17] : memref<1x120xf32, #tpu.memory_space<vmem>>, vector<1x120xf32>
    %23 = vector.broadcast %22 : vector<1x120xf32> to vector<30x120xf32>
    %24 = arith.addf %21, %23 : vector<30x120xf32>
    %cst_18 = arith.constant 0.000000e+00 : f32
    %25 = vector.broadcast %cst_18 : f32 to vector<30x120xf32>
    %26 = arith.maximumf %24, %25 : vector<30x120xf32>
    %c0_19 = arith.constant 0 : index
    %c0_20 = arith.constant 0 : index
    %27 = vector.load %arg6[%c0_19, %c0_20] : memref<120x56xf32, #tpu.memory_space<vmem>>, vector<120x56xf32>
    %cst_21 = arith.constant dense<0.000000e+00> : vector<30x56xf32>
    %28 = tpu.matmul %26, %27, %cst_21 {dimension_numbers = #tpu.dot_dimension_numbers<[1], [0], [0], [1], [0, 0, 1, 1], [], []>} : vector<30x120xf32>, vector<120x56xf32>, vector<30x56xf32> -> vector<30x56xf32>
    %c0_22 = arith.constant 0 : index
    %c0_23 = arith.constant 0 : index
    %29 = vector.load %arg7[%c0_22, %c0_23] : memref<120x56xf32, #tpu.memory_space<vmem>>, vector<120x56xf32>
    %cst_24 = arith.constant dense<0.000000e+00> : vector<30x56xf32>
    %30 = tpu.matmul %26, %29, %cst_24 {dimension_numbers = #tpu.dot_dimension_numbers<[1], [0], [0], [1], [0, 0, 1, 1], [], []>} : vector<30x120xf32>, vector<120x56xf32>, vector<30x56xf32> -> vector<30x56xf32>
    %31 = arith.maximumf %28, %30 : vector<30x56xf32>
    %32 = vector.extract_strided_slice %31 {offsets = [0, 0], sizes = [29, 56], strides = [1, 1]} : vector<30x56xf32> to vector<29x56xf32>
    %33 = vector.extract_strided_slice %31 {offsets = [1, 0], sizes = [29, 56], strides = [1, 1]} : vector<30x56xf32> to vector<29x56xf32>
    %34 = arith.maximumf %32, %33 : vector<29x56xf32>
    %35 = vector.extract_strided_slice %34 {offsets = [0, 0], sizes = [25, 56], strides = [1, 1]} : vector<29x56xf32> to vector<25x56xf32>
    %c0_25 = arith.constant 0 : index
    %c0_26 = arith.constant 0 : index
    %c0_27 = arith.constant 0 : index
    %36 = vector.load %arg8[%c0_25, %c0_26, %c0_27] : memref<3x56x24xf32, #tpu.memory_space<vmem>>, vector<1x56x24xf32>
    %37 = vector.shape_cast %36 : vector<1x56x24xf32> to vector<56x24xf32>
    %cst_28 = arith.constant dense<0.000000e+00> : vector<25x24xf32>
    %38 = tpu.matmul %35, %37, %cst_28 {dimension_numbers = #tpu.dot_dimension_numbers<[1], [0], [0], [1], [0, 0, 1, 1], [], []>} : vector<25x56xf32>, vector<56x24xf32>, vector<25x24xf32> -> vector<25x24xf32>
    %39 = vector.extract_strided_slice %34 {offsets = [2, 0], sizes = [25, 56], strides = [1, 1]} : vector<29x56xf32> to vector<25x56xf32>
    %c1_29 = arith.constant 1 : index
    %c0_30 = arith.constant 0 : index
    %c0_31 = arith.constant 0 : index
    %40 = vector.load %arg8[%c1_29, %c0_30, %c0_31] : memref<3x56x24xf32, #tpu.memory_space<vmem>>, vector<1x56x24xf32>
    %41 = vector.shape_cast %40 : vector<1x56x24xf32> to vector<56x24xf32>
    %cst_32 = arith.constant dense<0.000000e+00> : vector<25x24xf32>
    %42 = tpu.matmul %39, %41, %cst_32 {dimension_numbers = #tpu.dot_dimension_numbers<[1], [0], [0], [1], [0, 0, 1, 1], [], []>} : vector<25x56xf32>, vector<56x24xf32>, vector<25x24xf32> -> vector<25x24xf32>
    %43 = arith.addf %38, %42 : vector<25x24xf32>
    %44 = vector.extract_strided_slice %34 {offsets = [4, 0], sizes = [25, 56], strides = [1, 1]} : vector<29x56xf32> to vector<25x56xf32>
    %c2_33 = arith.constant 2 : index
    %c0_34 = arith.constant 0 : index
    %c0_35 = arith.constant 0 : index
    %45 = vector.load %arg8[%c2_33, %c0_34, %c0_35] : memref<3x56x24xf32, #tpu.memory_space<vmem>>, vector<1x56x24xf32>
    %46 = vector.shape_cast %45 : vector<1x56x24xf32> to vector<56x24xf32>
    %cst_36 = arith.constant dense<0.000000e+00> : vector<25x24xf32>
    %47 = tpu.matmul %44, %46, %cst_36 {dimension_numbers = #tpu.dot_dimension_numbers<[1], [0], [0], [1], [0, 0, 1, 1], [], []>} : vector<25x56xf32>, vector<56x24xf32>, vector<25x24xf32> -> vector<25x24xf32>
    %48 = arith.addf %43, %47 : vector<25x24xf32>
    %c0_37 = arith.constant 0 : index
    %c0_38 = arith.constant 0 : index
    %49 = vector.load %arg9[%c0_37, %c0_38] : memref<1x24xf32, #tpu.memory_space<vmem>>, vector<1x24xf32>
    %50 = vector.broadcast %49 : vector<1x24xf32> to vector<25x24xf32>
    %51 = arith.addf %48, %50 : vector<25x24xf32>
    %cst_39 = arith.constant 0.000000e+00 : f32
    %52 = vector.broadcast %cst_39 : f32 to vector<25x24xf32>
    %53 = arith.maximumf %51, %52 : vector<25x24xf32>
    %c0_40 = arith.constant 0 : index
    %c0_41 = arith.constant 0 : index
    %54 = vector.load %arg10[%c0_40, %c0_41] : memref<24x48xf32, #tpu.memory_space<vmem>>, vector<24x48xf32>
    %cst_42 = arith.constant dense<0.000000e+00> : vector<25x48xf32>
    %55 = tpu.matmul %53, %54, %cst_42 {dimension_numbers = #tpu.dot_dimension_numbers<[1], [0], [0], [1], [0, 0, 1, 1], [], []>} : vector<25x24xf32>, vector<24x48xf32>, vector<25x48xf32> -> vector<25x48xf32>
    %c0_43 = arith.constant 0 : index
    %c0_44 = arith.constant 0 : index
    %56 = vector.load %arg11[%c0_43, %c0_44] : memref<1x48xf32, #tpu.memory_space<vmem>>, vector<1x48xf32>
    %57 = vector.broadcast %56 : vector<1x48xf32> to vector<25x48xf32>
    %58 = arith.addf %55, %57 : vector<25x48xf32>
    %cst_45 = arith.constant 0.000000e+00 : f32
    %59 = vector.broadcast %cst_45 : f32 to vector<25x48xf32>
    %60 = arith.maximumf %58, %59 : vector<25x48xf32>
    %c0_46 = arith.constant 0 : index
    %c0_47 = arith.constant 0 : index
    %61 = vector.load %arg12[%c0_46, %c0_47] : memref<48x16xf32, #tpu.memory_space<vmem>>, vector<48x16xf32>
    %cst_48 = arith.constant dense<0.000000e+00> : vector<25x16xf32>
    %62 = tpu.matmul %60, %61, %cst_48 {dimension_numbers = #tpu.dot_dimension_numbers<[1], [0], [0], [1], [0, 0, 1, 1], [], []>} : vector<25x48xf32>, vector<48x16xf32>, vector<25x16xf32> -> vector<25x16xf32>
    %c0_49 = arith.constant 0 : index
    %c0_50 = arith.constant 0 : index
    %63 = vector.load %arg13[%c0_49, %c0_50] : memref<48x16xf32, #tpu.memory_space<vmem>>, vector<48x16xf32>
    %cst_51 = arith.constant dense<0.000000e+00> : vector<25x16xf32>
    %64 = tpu.matmul %60, %63, %cst_51 {dimension_numbers = #tpu.dot_dimension_numbers<[1], [0], [0], [1], [0, 0, 1, 1], [], []>} : vector<25x48xf32>, vector<48x16xf32>, vector<25x16xf32> -> vector<25x16xf32>
    %65 = arith.maximumf %62, %64 : vector<25x16xf32>
    %66 = vector.extract_strided_slice %65 {offsets = [0, 0], sizes = [23, 16], strides = [1, 1]} : vector<25x16xf32> to vector<23x16xf32>
    %67 = vector.extract_strided_slice %65 {offsets = [2, 0], sizes = [23, 16], strides = [1, 1]} : vector<25x16xf32> to vector<23x16xf32>
    %68 = arith.maximumf %66, %67 : vector<23x16xf32>
    %c0_52 = arith.constant 0 : index
    %c0_53 = arith.constant 0 : index
    %69 = vector.load %arg14[%c0_52, %c0_53] : memref<4x23xf32, #tpu.memory_space<vmem>>, vector<4x23xf32>
    %cst_54 = arith.constant dense<0.000000e+00> : vector<4x16xf32>
    %70 = tpu.matmul %69, %68, %cst_54 {dimension_numbers = #tpu.dot_dimension_numbers<[1], [0], [0], [1], [0, 0, 1, 1], [], []>} : vector<4x23xf32>, vector<23x16xf32>, vector<4x16xf32> -> vector<4x16xf32>
    %c0_55 = arith.constant 0 : index
    %c0_56 = arith.constant 0 : index
    %71 = vector.load %arg16[%c0_55, %c0_56] : memref<1x128xf32, #tpu.memory_space<vmem>>, vector<1x128xf32>
    %72 = vector.extract_strided_slice %70 {offsets = [0, 0], sizes = [2, 16], strides = [1, 1]} : vector<4x16xf32> to vector<2x16xf32>
    %c0_57 = arith.constant 0 : index
    %c0_58 = arith.constant 0 : index
    %c0_59 = arith.constant 0 : index
    %73 = vector.load %arg15[%c0_57, %c0_58, %c0_59] : memref<2x16x128xf32, #tpu.memory_space<vmem>>, vector<1x16x128xf32>
    %74 = vector.shape_cast %73 : vector<1x16x128xf32> to vector<16x128xf32>
    %cst_60 = arith.constant dense<0.000000e+00> : vector<2x128xf32>
    %75 = tpu.matmul %72, %74, %cst_60 {dimension_numbers = #tpu.dot_dimension_numbers<[1], [0], [0], [1], [0, 0, 1, 1], [], []>} : vector<2x16xf32>, vector<16x128xf32>, vector<2x128xf32> -> vector<2x128xf32>
    %76 = vector.broadcast %71 : vector<1x128xf32> to vector<2x128xf32>
    %77 = arith.addf %76, %75 : vector<2x128xf32>
    %78 = vector.extract_strided_slice %70 {offsets = [2, 0], sizes = [2, 16], strides = [1, 1]} : vector<4x16xf32> to vector<2x16xf32>
    %c1_61 = arith.constant 1 : index
    %c0_62 = arith.constant 0 : index
    %c0_63 = arith.constant 0 : index
    %79 = vector.load %arg15[%c1_61, %c0_62, %c0_63] : memref<2x16x128xf32, #tpu.memory_space<vmem>>, vector<1x16x128xf32>
    %80 = vector.shape_cast %79 : vector<1x16x128xf32> to vector<16x128xf32>
    %cst_64 = arith.constant dense<0.000000e+00> : vector<2x128xf32>
    %81 = tpu.matmul %78, %80, %cst_64 {dimension_numbers = #tpu.dot_dimension_numbers<[1], [0], [0], [1], [0, 0, 1, 1], [], []>} : vector<2x16xf32>, vector<16x128xf32>, vector<2x128xf32> -> vector<2x128xf32>
    %82 = arith.addf %77, %81 : vector<2x128xf32>
    %c0_65 = arith.constant 0 : index
    %c0_66 = arith.constant 0 : index
    %83 = vector.load %arg17[%c0_65, %c0_66] : memref<2x128xf32, #tpu.memory_space<vmem>>, vector<2x128xf32>
    tpu.vector_store %arg17[%c0_65, %c0_66], %82 {strides = array<i32>} : memref<2x128xf32, #tpu.memory_space<vmem>>, vector<2x128xf32>,
    return
  }
  func.func @transform_0(%arg0: i32) -> (i32, i32) {
    %c0_i32 = arith.constant 0 : i32
    %c0_i32_0 = arith.constant 0 : i32
    return %arg0, %c0_i32 : i32, i32
  }
  func.func @transform_1(%arg0: i32) -> (i32, i32, i32) {
    %c0_i32 = arith.constant 0 : i32
    %c0_i32_0 = arith.constant 0 : i32
    %c0_i32_1 = arith.constant 0 : i32
    %c0_i32_2 = arith.constant 0 : i32
    return %c0_i32, %c0_i32_0, %c0_i32_1 : i32, i32, i32
  }
  func.func @transform_2(%arg0: i32) -> (i32, i32) {
    %c0_i32 = arith.constant 0 : i32
    %c0_i32_0 = arith.constant 0 : i32
    %c0_i32_1 = arith.constant 0 : i32
    return %c0_i32, %c0_i32_0 : i32, i32
  }
  func.func @transform_3(%arg0: i32) -> (i32, i32) {
    %c0_i32 = arith.constant 0 : i32
    %c0_i32_0 = arith.constant 0 : i32
    %c0_i32_1 = arith.constant 0 : i32
    return %c0_i32, %c0_i32_0 : i32, i32
  }
  func.func @transform_4(%arg0: i32) -> (i32, i32) {
    %c0_i32 = arith.constant 0 : i32
    %c0_i32_0 = arith.constant 0 : i32
    %c0_i32_1 = arith.constant 0 : i32
    return %c0_i32, %c0_i32_0 : i32, i32
  }
  func.func @transform_5(%arg0: i32) -> (i32, i32) {
    %c0_i32 = arith.constant 0 : i32
    %c0_i32_0 = arith.constant 0 : i32
    %c0_i32_1 = arith.constant 0 : i32
    return %c0_i32, %c0_i32_0 : i32, i32
  }
  func.func @transform_6(%arg0: i32) -> (i32, i32) {
    %c0_i32 = arith.constant 0 : i32
    %c0_i32_0 = arith.constant 0 : i32
    %c0_i32_1 = arith.constant 0 : i32
    return %c0_i32, %c0_i32_0 : i32, i32
  }
  func.func @transform_7(%arg0: i32) -> (i32, i32, i32) {
    %c0_i32 = arith.constant 0 : i32
    %c0_i32_0 = arith.constant 0 : i32
    %c0_i32_1 = arith.constant 0 : i32
    %c0_i32_2 = arith.constant 0 : i32
    return %c0_i32, %c0_i32_0, %c0_i32_1 : i32, i32, i32
  }
  func.func @transform_8(%arg0: i32) -> (i32, i32) {
    %c0_i32 = arith.constant 0 : i32
    %c0_i32_0 = arith.constant 0 : i32
    %c0_i32_1 = arith.constant 0 : i32
    return %c0_i32, %c0_i32_0 : i32, i32
  }
  func.func @transform_9(%arg0: i32) -> (i32, i32) {
    %c0_i32 = arith.constant 0 : i32
    %c0_i32_0 = arith.constant 0 : i32
    %c0_i32_1 = arith.constant 0 : i32
    return %c0_i32, %c0_i32_0 : i32, i32
  }
  func.func @transform_10(%arg0: i32) -> (i32, i32) {
    %c0_i32 = arith.constant 0 : i32
    %c0_i32_0 = arith.constant 0 : i32
    %c0_i32_1 = arith.constant 0 : i32
    return %c0_i32, %c0_i32_0 : i32, i32
  }
  func.func @transform_11(%arg0: i32) -> (i32, i32) {
    %c0_i32 = arith.constant 0 : i32
    %c0_i32_0 = arith.constant 0 : i32
    %c0_i32_1 = arith.constant 0 : i32
    return %c0_i32, %c0_i32_0 : i32, i32
  }
  func.func @transform_12(%arg0: i32) -> (i32, i32) {
    %c0_i32 = arith.constant 0 : i32
    %c0_i32_0 = arith.constant 0 : i32
    %c0_i32_1 = arith.constant 0 : i32
    return %c0_i32, %c0_i32_0 : i32, i32
  }
  func.func @transform_13(%arg0: i32) -> (i32, i32) {
    %c0_i32 = arith.constant 0 : i32
    %c0_i32_0 = arith.constant 0 : i32
    %c0_i32_1 = arith.constant 0 : i32
    return %c0_i32, %c0_i32_0 : i32, i32
  }
  func.func @transform_14(%arg0: i32) -> (i32, i32, i32) {
    %c0_i32 = arith.constant 0 : i32
    %c0_i32_0 = arith.constant 0 : i32
    %c0_i32_1 = arith.constant 0 : i32
    %c0_i32_2 = arith.constant 0 : i32
    return %c0_i32, %c0_i32_0, %c0_i32_1 : i32, i32, i32
  }
  func.func @transform_15(%arg0: i32) -> (i32, i32) {
    %c0_i32 = arith.constant 0 : i32
    %c0_i32_0 = arith.constant 0 : i32
    %c0_i32_1 = arith.constant 0 : i32
    return %c0_i32, %c0_i32_0 : i32, i32
  }
  func.func @transform_16(%arg0: i32) -> (i32, i32) {
    %c0_i32 = arith.constant 0 : i32
    %c0_i32_0 = arith.constant 0 : i32
    return %arg0, %c0_i32 : i32, i32
  }
}

</mosaic_0001>

<llo_original>
// kernel: mul.1
$region0: #{mul.1}
  #allocation0 [shape = 's32[1]{0}', space=sflag, size = 0x4, scoped, tag = 'scoped memory for mul.1']
  %s0 = inlined_call_operand.vmem [shape: f32[4032], index: 0, kind: input, shape index: {}]
  %s1 = inlined_call_operand.vmem [shape: f32[4032], index: 1, kind: input, shape index: {}]
  %s2 = inlined_call_operand.vmem [shape: f32[4032], index: 2, kind: output, shape index: {}]
  %v3 = vld [vmem:[%s0] sm:$0xff]
  %v4 = vld [vmem:[%s1] sm:$0xff]
  %5 = xla_tuple %v3, %v4
  %6 = xla_tuple %5
  %v7 = vmul.f32 %v3, %v4
  %8 = xla_tuple %v7
  %9 = vst [vmem:[%s2] sm:$0xff] %v7
  %s10 = scalar_lea.vmem %s0, 8
  %v11 = vld [vmem:[%s10] sm:$0xff]
  %s12 = scalar_lea.vmem %s1, 8
  %v13 = vld [vmem:[%s12] sm:$0xff]
  %14 = xla_tuple %v11, %v13
  %15 = xla_tuple %14
  %v16 = vmul.f32 %v11, %v13
  %17 = xla_tuple %v16
  %s18 = scalar_lea.vmem %s2, 8
  %19 = vst [vmem:[%s18] sm:$0xff] %v16
  %s20 = scalar_lea.vmem %s0, 16
  %v21 = vld [vmem:[%s20] sm:$0xff]
  %s22 = scalar_lea.vmem %s1, 16
  %v23 = vld [vmem:[%s22] sm:$0xff]
  %24 = xla_tuple %v21, %v23
  %25 = xla_tuple %24
  %v26 = vmul.f32 %v21, %v23
  %27 = xla_tuple %v26
  %s28 = scalar_lea.vmem %s2, 16
  %29 = vst [vmem:[%s28] sm:$0xff] %v26
  %s30 = scalar_lea.vmem %s0, 24
  %v31 = vld [vmem:[%s30] sm:$0xff]
  %s32 = scalar_lea.vmem %s1, 24
  %v33 = vld [vmem:[%s32] sm:$0xff]
  %34 = xla_tuple %v31, %v33
  %35 = xla_tuple %34
  %v36 = vmul.f32 %v31, %v33
  %37 = xla_tuple %v36
  %s38 = scalar_lea.vmem %s2, 24
  %39 = vst [vmem:[%s38] sm:$0xff] %v36

// kernel: squeeze.2
$region0: #{squeeze.2}
  %s0 = inlined_call_operand.vmem [shape: f32[8,4,1,1], index: 0, kind: input, shape index: {}]
  %s1 = inlined_call_operand.vmem [shape: f32[32], index: 1, kind: output, shape index: {}]
  $region1: #{squeeze.2} parent=0
    #allocation0 [shape = 'u8[4096]{0}', space=vmem, size = 0x1000, scoped, tag = 'scoped mem for output reshape']
    %v2 = vld [vmem:[%s0] sm:$0x1]
    %vm3 = vcmask 31744
    %4 = vst.msk [vmem:[#allocation0] sm:$0x1] %vm3, %v2
    %s5 = scalar_lea.vmem %s0, 7
    %v6 = vld [vmem:[%s5] sm:$0x1]
    %7 = vrot.lane.b32.xlu0 %v6, 28
    %v8 = vpop.permute.xlu0 %7
    %vm9 = vcmask 261344
    %10 = vst.msk [vmem:[#allocation0] sm:$0x1] %vm9, %v8
    %s11 = scalar_lea.vmem %s0, 6
    %v12 = vld [vmem:[%s11] sm:$0x1]
    %13 = vrot.lane.b32.xlu0 %v12, 24
    %v14 = vpop.permute.xlu0 %13
    %vm15 = vcmask 228544
    %16 = vst.msk [vmem:[#allocation0] sm:$0x1] %vm15, %v14
    %s17 = scalar_lea.vmem %s0, 5
    %v18 = vld [vmem:[%s17] sm:$0x1]
    %19 = vrot.lane.b32.xlu0 %v18, 20
    %v20 = vpop.permute.xlu0 %19
    %vm21 = vcmask 195744
    %22 = vst.msk [vmem:[#allocation0] sm:$0x1] %vm21, %v20
    %s23 = scalar_lea.vmem %s0, 4
    %v24 = vld [vmem:[%s23] sm:$0x1]
    %25 = vrot.lane.b32.xlu0 %v24, 16
    %v26 = vpop.permute.xlu0 %25
    %vm27 = vcmask 162944
    %28 = vst.msk [vmem:[#allocation0] sm:$0x1] %vm27, %v26
    %s29 = scalar_lea.vmem %s0, 3
    %v30 = vld [vmem:[%s29] sm:$0x1]
    %31 = vrot.lane.b32.xlu0 %v30, 12
    %v32 = vpop.permute.xlu0 %31
    %vm33 = vcmask 130144
    %34 = vst.msk [vmem:[#allocation0] sm:$0x1] %vm33, %v32
    %s35 = scalar_lea.vmem %s0, 2
    %v36 = vld [vmem:[%s35] sm:$0x1]
    %37 = vrot.lane.b32.xlu0 %v36, 8
    %v38 = vpop.permute.xlu0 %37
    %vm39 = vcmask 97344
    %40 = vst.msk [vmem:[#allocation0] sm:$0x1] %vm39, %v38
    %s41 = scalar_lea.vmem %s0, 1
    %v42 = vld [vmem:[%s41] sm:$0x1]
    %43 = vrot.lane.b32.xlu0 %v42, 4
    %v44 = vpop.permute.xlu0 %43
    %vm45 = vcmask 64544
    %46 = vst.msk [vmem:[#allocation0] sm:$0x1] %vm45, %v44
    %s48 = sshllo.u32 0, 1
    %v50 = vld [vmem:[#allocation0] sm:%s48]
    %s51 = sshllo.u32 0, 1
    %52 = vst [vmem:[%s1] sm:%s51] %v50

// kernel: mul.2
$region0: #{mul.2}
  #allocation0 [shape = 's32[1]{0}', space=sflag, size = 0x4, scoped, tag = 'scoped memory for mul.2']
  %s0 = inlined_call_operand.vmem [shape: f32[7200], index: 0, kind: input, shape index: {}]
  %s1 = inlined_call_operand.vmem [shape: f32[7200], index: 1, kind: input, shape index: {}]
  %s2 = inlined_call_operand.vmem [shape: f32[7200], index: 2, kind: output, shape index: {}]
  %v3 = vld [vmem:[%s0] sm:$0xff]
  %v4 = vld [vmem:[%s1] sm:$0xff]
  %5 = xla_tuple %v3, %v4
  %6 = xla_tuple %5
  %v7 = vmul.f32 %v3, %v4
  %8 = xla_tuple %v7
  %9 = vst [vmem:[%s2] sm:$0xff] %v7
  %s10 = scalar_lea.vmem %s0, 8
  %v11 = vld [vmem:[%s10] sm:$0xff]
  %s12 = scalar_lea.vmem %s1, 8
  %v13 = vld [vmem:[%s12] sm:$0xff]
  %14 = xla_tuple %v11, %v13
  %15 = xla_tuple %14
  %v16 = vmul.f32 %v11, %v13
  %17 = xla_tuple %v16
  %s18 = scalar_lea.vmem %s2, 8
  %19 = vst [vmem:[%s18] sm:$0xff] %v16
  %s20 = scalar_lea.vmem %s0, 16
  %v21 = vld [vmem:[%s20] sm:$0xff]
  %s22 = scalar_lea.vmem %s1, 16
  %v23 = vld [vmem:[%s22] sm:$0xff]
  %24 = xla_tuple %v21, %v23
  %25 = xla_tuple %24
  %v26 = vmul.f32 %v21, %v23
  %27 = xla_tuple %v26
  %s28 = scalar_lea.vmem %s2, 16
  %29 = vst [vmem:[%s28] sm:$0xff] %v26
  %s30 = scalar_lea.vmem %s0, 24
  %v31 = vld [vmem:[%s30] sm:$0xff]
  %s32 = scalar_lea.vmem %s1, 24
  %v33 = vld [vmem:[%s32] sm:$0xff]
  %34 = xla_tuple %v31, %v33
  %35 = xla_tuple %34
  %v36 = vmul.f32 %v31, %v33
  %37 = xla_tuple %v36
  %s38 = scalar_lea.vmem %s2, 24
  %39 = vst [vmem:[%s38] sm:$0xff] %v36
  %s40 = scalar_lea.vmem %s0, 32
  %v41 = vld [vmem:[%s40] sm:$0xff]
  %s42 = scalar_lea.vmem %s1, 32
  %v43 = vld [vmem:[%s42] sm:$0xff]
  %44 = xla_tuple %v41, %v43
  %45 = xla_tuple %44
  %v46 = vmul.f32 %v41, %v43
  %47 = xla_tuple %v46
  %s48 = scalar_lea.vmem %s2, 32
  %49 = vst [vmem:[%s48] sm:$0xff] %v46
  %s50 = scalar_lea.vmem %s0, 40
  %v51 = vld [vmem:[%s50] sm:$0xff]
  %s52 = scalar_lea.vmem %s1, 40
  %v53 = vld [vmem:[%s52] sm:$0xff]
  %54 = xla_tuple %v51, %v53
  %55 = xla_tuple %54
  %v56 = vmul.f32 %v51, %v53
  %57 = xla_tuple %v56
  %s58 = scalar_lea.vmem %s2, 40
  %59 = vst [vmem:[%s58] sm:$0xff] %v56
  %s60 = scalar_lea.vmem %s0, 48
  %v61 = vld [vmem:[%s60] sm:$0xff]
  %s62 = scalar_lea.vmem %s1, 48
  %v63 = vld [vmem:[%s62] sm:$0xff]
  %64 = xla_tuple %v61, %v63
  %65 = xla_tuple %64
  %v66 = vmul.f32 %v61, %v63
  %67 = xla_tuple %v66
  %s68 = scalar_lea.vmem %s2, 48
  %69 = vst [vmem:[%s68] sm:$0xff] %v66
  %s70 = scalar_lea.vmem %s0, 56
  %v71 = vld [vmem:[%s70] sm:$0xff]
  %s72 = scalar_lea.vmem %s1, 56
  %v73 = vld [vmem:[%s72] sm:$0xff]
  %74 = xla_tuple %v71, %v73
  %75 = xla_tuple %74
  %v76 = vmul.f32 %v71, %v73
  %77 = xla_tuple %v76
  %s78 = scalar_lea.vmem %s2, 56
  %79 = vst [vmem:[%s78] sm:$0xff] %v76

// kernel: mul.0
$region0: #{mul.0}
  #allocation0 [shape = 's32[1]{0}', space=sflag, size = 0x4, scoped, tag = 'scoped memory for mul.0']
  %s0 = inlined_call_operand.vmem [shape: f32[5760], index: 0, kind: input, shape index: {}]
  %s1 = inlined_call_operand.vmem [shape: f32[5760], index: 1, kind: input, shape index: {}]
  %s2 = inlined_call_operand.vmem [shape: f32[5760], index: 2, kind: output, shape index: {}]
  %v3 = vld [vmem:[%s0] sm:$0xff]
  %v4 = vld [vmem:[%s1] sm:$0xff]
  %5 = xla_tuple %v3, %v4
  %6 = xla_tuple %5
  %v7 = vmul.f32 %v3, %v4
  %8 = xla_tuple %v7
  %9 = vst [vmem:[%s2] sm:$0xff] %v7
  %s10 = scalar_lea.vmem %s0, 8
  %v11 = vld [vmem:[%s10] sm:$0xff]
  %s12 = scalar_lea.vmem %s1, 8
  %v13 = vld [vmem:[%s12] sm:$0xff]
  %14 = xla_tuple %v11, %v13
  %15 = xla_tuple %14
  %v16 = vmul.f32 %v11, %v13
  %17 = xla_tuple %v16
  %s18 = scalar_lea.vmem %s2, 8
  %19 = vst [vmem:[%s18] sm:$0xff] %v16
  %s20 = scalar_lea.vmem %s0, 16
  %v21 = vld [vmem:[%s20] sm:$0xff]
  %s22 = scalar_lea.vmem %s1, 16
  %v23 = vld [vmem:[%s22] sm:$0xff]
  %24 = xla_tuple %v21, %v23
  %25 = xla_tuple %24
  %v26 = vmul.f32 %v21, %v23
  %27 = xla_tuple %v26
  %s28 = scalar_lea.vmem %s2, 16
  %29 = vst [vmem:[%s28] sm:$0xff] %v26
  %s30 = scalar_lea.vmem %s0, 24
  %v31 = vld [vmem:[%s30] sm:$0xff]
  %s32 = scalar_lea.vmem %s1, 24
  %v33 = vld [vmem:[%s32] sm:$0xff]
  %34 = xla_tuple %v31, %v33
  %35 = xla_tuple %34
  %v36 = vmul.f32 %v31, %v33
  %37 = xla_tuple %v36
  %s38 = scalar_lea.vmem %s2, 24
  %39 = vst [vmem:[%s38] sm:$0xff] %v36
  %s40 = scalar_lea.vmem %s0, 32
  %v41 = vld [vmem:[%s40] sm:$0xff]
  %s42 = scalar_lea.vmem %s1, 32
  %v43 = vld [vmem:[%s42] sm:$0xff]
  %44 = xla_tuple %v41, %v43
  %45 = xla_tuple %44
  %v46 = vmul.f32 %v41, %v43
  %47 = xla_tuple %v46
  %s48 = scalar_lea.vmem %s2, 32
  %49 = vst [vmem:[%s48] sm:$0xff] %v46
  %s50 = scalar_lea.vmem %s0, 40
  %v51 = vld [vmem:[%s50] sm:$0xff]
  %s52 = scalar_lea.vmem %s1, 40
  %v53 = vld [vmem:[%s52] sm:$0xff]
  %54 = xla_tuple %v51, %v53
  %55 = xla_tuple %54
  %v56 = vmul.f32 %v51, %v53
  %57 = xla_tuple %v56
  %s58 = scalar_lea.vmem %s2, 40
  %59 = vst [vmem:[%s58] sm:$0xff] %v56

// kernel: squeeze.3
$region0: #{squeeze.3}
  %s0 = inlined_call_operand.vmem [shape: f32[16,8,1,1], index: 0, kind: input, shape index: {}]
  %s1 = inlined_call_operand.vmem [shape: f32[128], index: 1, kind: output, shape index: {}]
  $region1: #{squeeze.3} parent=0
    #allocation0 [shape = 'u8[4096]{0}', space=vmem, size = 0x1000, scoped, tag = 'scoped mem for output reshape']
    %v2 = vld [vmem:[%s0] sm:$0x1]
    %vm3 = vcmask 64512
    %4 = vst.msk [vmem:[#allocation0] sm:$0x1] %vm3, %v2
    %s5 = scalar_lea.vmem %s0, 15
    %v6 = vld [vmem:[%s5] sm:$0x1]
    %7 = vrot.lane.b32.xlu0 %v6, 120
    %v8 = vpop.permute.xlu0 %7
    %vm9 = vcmask 1048512
    %10 = vst.msk [vmem:[#allocation0] sm:$0x1] %vm9, %v8
    %s11 = scalar_lea.vmem %s0, 14
    %v12 = vld [vmem:[%s11] sm:$0x1]
    %13 = vrot.lane.b32.xlu0 %v12, 112
    %v14 = vpop.permute.xlu0 %13
    %vm15 = vcmask 982912
    %16 = vst.msk [vmem:[#allocation0] sm:$0x1] %vm15, %v14
    %s17 = scalar_lea.vmem %s0, 13
    %v18 = vld [vmem:[%s17] sm:$0x1]
    %19 = vrot.lane.b32.xlu0 %v18, 104
    %v20 = vpop.permute.xlu0 %19
    %vm21 = vcmask 917312
    %22 = vst.msk [vmem:[#allocation0] sm:$0x1] %vm21, %v20
    %s23 = scalar_lea.vmem %s0, 12
    %v24 = vld [vmem:[%s23] sm:$0x1]
    %25 = vrot.lane.b32.xlu0 %v24, 96
    %v26 = vpop.permute.xlu0 %25
    %vm27 = vcmask 851712
    %28 = vst.msk [vmem:[#allocation0] sm:$0x1] %vm27, %v26
    %s29 = scalar_lea.vmem %s0, 11
    %v30 = vld [vmem:[%s29] sm:$0x1]
    %31 = vrot.lane.b32.xlu0 %v30, 88
    %v32 = vpop.permute.xlu0 %31
    %vm33 = vcmask 786112
    %34 = vst.msk [vmem:[#allocation0] sm:$0x1] %vm33, %v32
    %s35 = scalar_lea.vmem %s0, 10
    %v36 = vld [vmem:[%s35] sm:$0x1]
    %37 = vrot.lane.b32.xlu0 %v36, 80
    %v38 = vpop.permute.xlu0 %37
    %vm39 = vcmask 720512
    %40 = vst.msk [vmem:[#allocation0] sm:$0x1] %vm39, %v38
    %s41 = scalar_lea.vmem %s0, 9
    %v42 = vld [vmem:[%s41] sm:$0x1]
    %43 = vrot.lane.b32.xlu0 %v42, 72
    %v44 = vpop.permute.xlu0 %43
    %vm45 = vcmask 654912
    %46 = vst.msk [vmem:[#allocation0] sm:$0x1] %vm45, %v44
    %s47 = scalar_lea.vmem %s0, 8
    %v48 = vld [vmem:[%s47] sm:$0x1]
    %49 = vrot.lane.b32.xlu0 %v48, 64
    %v50 = vpop.permute.xlu0 %49
    %vm51 = vcmask 589312
    %52 = vst.msk [vmem:[#allocation0] sm:$0x1] %vm51, %v50
    %s53 = scalar_lea.vmem %s0, 7
    %v54 = vld [vmem:[%s53] sm:$0x1]
    %55 = vrot.lane.b32.xlu0 %v54, 56
    %v56 = vpop.permute.xlu0 %55
    %vm57 = vcmask 523712
    %58 = vst.msk [vmem:[#allocation0] sm:$0x1] %vm57, %v56
    %s59 = scalar_lea.vmem %s0, 6
    %v60 = vld [vmem:[%s59] sm:$0x1]
    %61 = vrot.lane.b32.xlu0 %v60, 48
    %v62 = vpop.permute.xlu0 %61
    %vm63 = vcmask 458112
    %64 = vst.msk [vmem:[#allocation0] sm:$0x1] %vm63, %v62
    %s65 = scalar_lea.vmem %s0, 5
    %v66 = vld [vmem:[%s65] sm:$0x1]
    %67 = vrot.lane.b32.xlu0 %v66, 40
    %v68 = vpop.permute.xlu0 %67
    %vm69 = vcmask 392512
    %70 = vst.msk [vmem:[#allocation0] sm:$0x1] %vm69, %v68
    %s71 = scalar_lea.vmem %s0, 4
    %v72 = vld [vmem:[%s71] sm:$0x1]
    %73 = vrot.lane.b32.xlu0 %v72, 32
    %v74 = vpop.permute.xlu0 %73
    %vm75 = vcmask 326912
    %76 = vst.msk [vmem:[#allocation0] sm:$0x1] %vm75, %v74
    %s77 = scalar_lea.vmem %s0, 3
    %v78 = vld [vmem:[%s77] sm:$0x1]
    %79 = vrot.lane.b32.xlu0 %v78, 24
    %v80 = vpop.permute.xlu0 %79
    %vm81 = vcmask 261312
    %82 = vst.msk [vmem:[#allocation0] sm:$0x1] %vm81, %v80
    %s83 = scalar_lea.vmem %s0, 2
    %v84 = vld [vmem:[%s83] sm:$0x1]
    %85 = vrot.lane.b32.xlu0 %v84, 16
    %v86 = vpop.permute.xlu0 %85
    %vm87 = vcmask 195712
    %88 = vst.msk [vmem:[#allocation0] sm:$0x1] %vm87, %v86
    %s89 = scalar_lea.vmem %s0, 1
    %v90 = vld [vmem:[%s89] sm:$0x1]
    %91 = vrot.lane.b32.xlu0 %v90, 8
    %v92 = vpop.permute.xlu0 %91
    %vm93 = vcmask 130112
    %94 = vst.msk [vmem:[#allocation0] sm:$0x1] %vm93, %v92
    %s96 = sshllo.u32 0, 1
    %v98 = vld [vmem:[#allocation0] sm:%s96]
    %s99 = sshllo.u32 0, 1
    %100 = vst [vmem:[%s1] sm:%s99] %v98

// kernel: mul.3
$region0: #{mul.3}
  #allocation0 [shape = 's32[1]{0}', space=sflag, size = 0x4, scoped, tag = 'scoped memory for mul.3']
  %s0 = inlined_call_operand.vmem [shape: f32[1152], index: 0, kind: input, shape index: {}]
  %s1 = inlined_call_operand.vmem [shape: f32[1152], index: 1, kind: input, shape index: {}]
  %s2 = inlined_call_operand.vmem [shape: f32[1152], index: 2, kind: output, shape index: {}]
  %v3 = vld [vmem:[%s0] sm:$0xff]
  %v4 = vld [vmem:[%s1] sm:$0xff]
  %5 = xla_tuple %v3, %v4
  %6 = xla_tuple %5
  %v7 = vmul.f32 %v3, %v4
  %8 = xla_tuple %v7
  %9 = vst [vmem:[%s2] sm:$0xff] %v7
  %s10 = scalar_lea.vmem %s0, 8
  %v11 = vld [vmem:[%s10] sm:$0xff]
  %s12 = scalar_lea.vmem %s1, 8
  %v13 = vld [vmem:[%s12] sm:$0xff]
  %14 = xla_tuple %v11, %v13
  %15 = xla_tuple %14
  %v16 = vmul.f32 %v11, %v13
  %17 = xla_tuple %v16
  %s18 = scalar_lea.vmem %s2, 8
  %19 = vst [vmem:[%s18] sm:$0xff] %v16

// kernel: cnn2_forward.1
$region0: #{cnn2_forward.1}
  #allocation0 [shape = 'u32[]', space=smem, size = 0x4, offset = 0x4, fixed_abs, tag = 'smem constant byte address 0x4 - core index']
  #allocation1 [shape = 'u32[144,128]{1,0:T(1,128)}', space=vmem, size = 0x12000, scoped, tag = 'internal scratch']
  %s0 = inlined_call_operand.vmem [shape: f32[32,32], index: 0, kind: input, shape index: {}]
  %s1 = inlined_call_operand.vmem [shape: f32[3,32,60], index: 1, kind: input, shape index: {}]
  %s2 = inlined_call_operand.vmem [shape: f32[1,60], index: 2, kind: input, shape index: {}]
  %s3 = inlined_call_operand.vmem [shape: f32[60,120], index: 3, kind: input, shape index: {}]
  %s4 = inlined_call_operand.vmem [shape: f32[1,120], index: 4, kind: input, shape index: {}]
  %s5 = inlined_call_operand.vmem [shape: f32[120,56], index: 5, kind: input, shape index: {}]
  %s6 = inlined_call_operand.vmem [shape: f32[120,56], index: 6, kind: input, shape index: {}]
  %s7 = inlined_call_operand.vmem [shape: f32[3,56,24], index: 7, kind: input, shape index: {}]
  %s8 = inlined_call_operand.vmem [shape: f32[1,24], index: 8, kind: input, shape index: {}]
  %s9 = inlined_call_operand.vmem [shape: f32[24,48], index: 9, kind: input, shape index: {}]
  %s10 = inlined_call_operand.vmem [shape: f32[1,48], index: 10, kind: input, shape index: {}]
  %s11 = inlined_call_operand.vmem [shape: f32[48,16], index: 11, kind: input, shape index: {}]
  %s12 = inlined_call_operand.vmem [shape: f32[48,16], index: 12, kind: input, shape index: {}]
  %s13 = inlined_call_operand.vmem [shape: f32[4,23], index: 13, kind: input, shape index: {}]
  %s14 = inlined_call_operand.vmem [shape: f32[2,16,128], index: 14, kind: input, shape index: {}]
  %s15 = inlined_call_operand.vmem [shape: f32[1,128], index: 15, kind: input, shape index: {}]
  %s16 = inlined_call_operand.hbm [shape: f32[2,128], index: 16, kind: output, shape index: {}]
  %s17 = sld [smem:[#allocation0]]
  $region74: #{cnn2_forward.1} parent=0
    _
  %s19 = ssub.s32 1, %s17
  %s20 = scalar_select 0, %s19, %s17
  $region1: #{cnn2_forward.1} parent=0
    #allocation2 [shape = 'u8[1024]{0}', space=vmem, size = 0x400, scoped, tag = 'output window, operand 0, single buffered']
    #allocation3 [shape = 's32[1]{0}', space=sflag, size = 0x4, scoped, tag = 'scoped memory for cnn2_forward.1']
    %21 = vsyncpa [#allocation3], 0
    // Predicated region
    $region2: #{cnn2_forward.1} parent=1 // pred_check
      _
    $region3: #{cnn2_forward.1} parent=1 // pred_check_branch
      %23 = sbr.rel (0) target = $region5
    $region4: #{cnn2_forward.1} parent=1 // pred_region
      _
    $region5: #{cnn2_forward.1} parent=1 // pred_fallthru
      _
    // Predicated region
    $region6: #{cnn2_forward.1} parent=1 // pred_check
      _
    $region7: #{cnn2_forward.1} parent=1 // pred_check_branch
      %25 = sbr.rel (0) target = $region9
    $region8: #{cnn2_forward.1} parent=1 // pred_region
      _
    $region9: #{cnn2_forward.1} parent=1 // pred_fallthru
      _
    // Predicated region
    $region10: #{cnn2_forward.1} parent=1 // pred_check
      _
    $region11: #{cnn2_forward.1} parent=1 // pred_check_branch
      %27 = sbr.rel (0) target = $region13
    $region12: #{cnn2_forward.1} parent=1 // pred_region
      _
    $region13: #{cnn2_forward.1} parent=1 // pred_fallthru
      _
    // Predicated region
    $region14: #{cnn2_forward.1} parent=1 // pred_check
      _
    $region15: #{cnn2_forward.1} parent=1 // pred_check_branch
      %29 = sbr.rel (0) target = $region17
    $region16: #{cnn2_forward.1} parent=1 // pred_region
      _
    $region17: #{cnn2_forward.1} parent=1 // pred_fallthru
      _
    // Predicated region
    $region18: #{cnn2_forward.1} parent=1 // pred_check
      _
    $region19: #{cnn2_forward.1} parent=1 // pred_check_branch
      %31 = sbr.rel (0) target = $region21
    $region20: #{cnn2_forward.1} parent=1 // pred_region
      _
    $region21: #{cnn2_forward.1} parent=1 // pred_fallthru
      _
    // Predicated region
    $region22: #{cnn2_forward.1} parent=1 // pred_check
      _
    $region23: #{cnn2_forward.1} parent=1 // pred_check_branch
      %33 = sbr.rel (0) target = $region25
    $region24: #{cnn2_forward.1} parent=1 // pred_region
      _
    $region25: #{cnn2_forward.1} parent=1 // pred_fallthru
      _
    // Predicated region
    $region26: #{cnn2_forward.1} parent=1 // pred_check
      _
    $region27: #{cnn2_forward.1} parent=1 // pred_check_branch
      %35 = sbr.rel (0) target = $region29
    $region28: #{cnn2_forward.1} parent=1 // pred_region
      _
    $region29: #{cnn2_forward.1} parent=1 // pred_fallthru
      _
    // Predicated region
    $region30: #{cnn2_forward.1} parent=1 // pred_check
      _
    $region31: #{cnn2_forward.1} parent=1 // pred_check_branch
      %37 = sbr.rel (0) target = $region33
    $region32: #{cnn2_forward.1} parent=1 // pred_region
      _
    $region33: #{cnn2_forward.1} parent=1 // pred_fallthru
      _
    // Predicated region
    $region34: #{cnn2_forward.1} parent=1 // pred_check
      _
    $region35: #{cnn2_forward.1} parent=1 // pred_check_branch
      %39 = sbr.rel (0) target = $region37
    $region36: #{cnn2_forward.1} parent=1 // pred_region
      _
    $region37: #{cnn2_forward.1} parent=1 // pred_fallthru
      _
    // Predicated region
    $region38: #{cnn2_forward.1} parent=1 // pred_check
      _
    $region39: #{cnn2_forward.1} parent=1 // pred_check_branch
      %41 = sbr.rel (0) target = $region41
    $region40: #{cnn2_forward.1} parent=1 // pred_region
      _
    $region41: #{cnn2_forward.1} parent=1 // pred_fallthru
      _
    // Predicated region
    $region42: #{cnn2_forward.1} parent=1 // pred_check
      _
    $region43: #{cnn2_forward.1} parent=1 // pred_check_branch
      %43 = sbr.rel (0) target = $region45
    $region44: #{cnn2_forward.1} parent=1 // pred_region
      _
    $region45: #{cnn2_forward.1} parent=1 // pred_fallthru
      _
    // Predicated region
    $region46: #{cnn2_forward.1} parent=1 // pred_check
      _
    $region47: #{cnn2_forward.1} parent=1 // pred_check_branch
      %45 = sbr.rel (0) target = $region49
    $region48: #{cnn2_forward.1} parent=1 // pred_region
      _
    $region49: #{cnn2_forward.1} parent=1 // pred_fallthru
      _
    // Predicated region
    $region50: #{cnn2_forward.1} parent=1 // pred_check
      _
    $region51: #{cnn2_forward.1} parent=1 // pred_check_branch
      %47 = sbr.rel (0) target = $region53
    $region52: #{cnn2_forward.1} parent=1 // pred_region
      _
    $region53: #{cnn2_forward.1} parent=1 // pred_fallthru
      _
    // Predicated region
    $region54: #{cnn2_forward.1} parent=1 // pred_check
      _
    $region55: #{cnn2_forward.1} parent=1 // pred_check_branch
      %49 = sbr.rel (0) target = $region57
    $region56: #{cnn2_forward.1} parent=1 // pred_region
      _
    $region57: #{cnn2_forward.1} parent=1 // pred_fallthru
      _
    // Predicated region
    $region58: #{cnn2_forward.1} parent=1 // pred_check
      _
    $region59: #{cnn2_forward.1} parent=1 // pred_check_branch
      %51 = sbr.rel (0) target = $region61
    $region60: #{cnn2_forward.1} parent=1 // pred_region
      _
    $region61: #{cnn2_forward.1} parent=1 // pred_fallthru
      _
    // Predicated region
    $region62: #{cnn2_forward.1} parent=1 // pred_check
      _
    $region63: #{cnn2_forward.1} parent=1 // pred_check_branch
      %53 = sbr.rel (0) target = $region65
    $region64: #{cnn2_forward.1} parent=1 // pred_region
      _
    $region65: #{cnn2_forward.1} parent=1 // pred_fallthru
      _
    %v54 = vld [vmem:[%s0] sm:$0xff]
    %v55 = vld [vmem:[%s0 + $0x8] sm:$0xff]
    %v56 = vld [vmem:[%s0 + $0x10] sm:$0xff]
    %v57 = vld [vmem:[%s0 + $0x18] sm:$0xff]
    %v58 = vld [vmem:[%s1] sm:$0xff]
    %v59 = vld [vmem:[%s1 + $0x8] sm:$0xff]
    %v60 = vld [vmem:[%s1 + $0x10] sm:$0xff]
    %v61 = vld [vmem:[%s1 + $0x18] sm:$0xff]
    %s62 = scalar_lea.vmem %s1, 32
    %v63 = vld [vmem:[%s62] sm:$0xff]
    %v64 = vld [vmem:[%s62 + $0x8] sm:$0xff]
    %v65 = vld [vmem:[%s62 + $0x10] sm:$0xff]
    %v66 = vld [vmem:[%s62 + $0x18] sm:$0xff]
    %vm71 = vcmask 1046528
    %v72 = vrot.slane %v54, 1
    %v73 = vrot.slane %v55, 1
    %v74 = vsel %vm71, %v72, %v73
    %v75 = vrot.slane %v56, 1
    %v76 = vsel %vm71, %v73, %v75
    %v77 = vrot.slane %v57, 1
    %v78 = vsel %vm71, %v75, %v77
    %vm79 = vcmask 261120
    %v80 = vsel %vm79, %v74, 0
    %v82 = vsel %vm79, %v76, 0
    %v84 = vsel %vm79, %v78, 0
    %v86 = vsel %vm79, %v77, 0
    %88 = vmatprep.subr.mxu0 0.0
    %89 = vmatpush1.msra.mxu0 %v63
    %90 = vmatprep.subr.mxu0 0.0
    %91 = vmatpush1.msra.mxu0 %v64
    %92 = vmatprep.subr.mxu0 0.0
    %93 = vmatpush1.msra.mxu0 %v65
    %94 = vmatprep.subr.mxu0 0.0
    %95 = vmatpush1.msra.mxu0 %v66
    %96 = vmatprep.subr.mxu0 0.0
    %97 = vmatpush1.msra.mxu0 0.0
    %98 = vmatprep.subr.mxu0 0.0
    %99 = vmatpush1.msra.mxu0 0.0
    %100 = vmatprep.subr.mxu0 0.0
    %101 = vmatpush1.msra.mxu0 0.0
    %102 = vmatprep.subr.mxu0 0.0
    %103 = vmatpush1.msra.mxu0 0.0
    %104 = vmatprep.subr.mxu0 0.0
    %105 = vmatpush1.msra.mxu0 0.0
    %106 = vmatprep.subr.mxu0 0.0
    %107 = vmatpush1.msra.mxu0 0.0
    %108 = vmatprep.subr.mxu0 0.0
    %109 = vmatpush1.msra.mxu0 0.0
    %110 = vmatprep.subr.mxu0 0.0
    %111 = vmatpush1.msra.mxu0 0.0
    %112 = vmatprep.subr.mxu0 0.0
    %113 = vmatpush1.msra.mxu0 0.0
    %114 = vmatprep.subr.mxu0 0.0
    %115 = vmatpush1.msra.mxu0 0.0
    %116 = vmatprep.subr.mxu0 0.0
    %117 = vmatpush1.msra.mxu0 0.0
    %118 = vmatprep.subr.mxu0 0.0
    %119 = vmatpush1.msra.mxu0 0.0
    %120 = vmatprep.subr.mxu0 0.0
    %121 = vmatpush1.msra.mxu0 0.0
    %122 = vmatprep.subr.mxu0 0.0
    %123 = vmatpush1.msra.mxu0 0.0
    %124 = vmatprep.subr.mxu0 0.0
    %125 = vmatpush1.msra.mxu0 0.0
    %126 = vmatprep.subr.mxu0 0.0
    %127 = vmatpush1.msra.mxu0 0.0
    %128 = vmatprep.subr.mxu0 0.0
    %129 = vmatpush1.msra.mxu0 0.0
    %130 = vmatprep.subr.mxu0 0.0
    %131 = vmatpush1.msra.mxu0 0.0
    %132 = vmatprep.subr.mxu0 0.0
    %133 = vmatpush1.msra.mxu0 0.0
    %134 = vmatprep.subr.mxu0 0.0
    %135 = vmatpush1.msra.mxu0 0.0
    %136 = vmatprep.subr.mxu0 0.0
    %137 = vmatpush1.msra.mxu0 0.0
    %138 = vmatprep.subr.mxu0 0.0
    %139 = vmatpush1.msra.mxu0 0.0
    %140 = vmatprep.subr.mxu0 0.0
    %141 = vmatpush1.msra.mxu0 0.0
    %142 = vmatprep.subr.mxu0 0.0
    %143 = vmatpush1.msra.mxu0 0.0
    %144 = vmatprep.subr.mxu0 0.0
    %145 = vmatpush1.msra.mxu0 0.0
    %146 = vmatprep.subr.mxu0 0.0
    %147 = vmatpush1.msra.mxu0 0.0
    %148 = vmatprep.subr.mxu0 0.0
    %149 = vmatpush1.msra.mxu0 0.0
    %150 = vmatprep.subr.mxu0 0.0
    %151 = vmatpush1.msra.mxu0 0.0
    %152 = vmatprep.mubr.f32.mxu0 0.0
    %153 = vmatmul.mubr.f32.gmra.mrb[0].mxu0 %v80
    %v154 = vpop.f32.mrb[0].mxu0
    %v155 = vadd.f32 0.0, %v154
    %v156 = vpop.f32.mrb[0].mxu0
    %157 = vmatprep.mubr.f32.mxu0 0.0
    %158 = vmatmul.mubr.f32.gmra.mrb[0].mxu0 %v82
    %v159 = vpop.f32.mrb[0].mxu0
    %v160 = vadd.f32 0.0, %v159
    %v161 = vpop.f32.mrb[0].mxu0
    %162 = vmatprep.mubr.f32.mxu0 0.0
    %163 = vmatmul.mubr.f32.gmra.mrb[0].mxu0 %v84
    %v164 = vpop.f32.mrb[0].mxu0
    %v165 = vadd.f32 0.0, %v164
    %v166 = vpop.f32.mrb[0].mxu0
    %167 = vmatprep.mubr.f32.mxu0 0.0
    %168 = vmatmul.mubr.f32.gmra.mrb[0].mxu0 %v86
    %v169 = vpop.f32.mrb[0].mxu0
    %v170 = vadd.f32 0.0, %v169
    %v171 = vpop.f32.mrb[0].mxu0
    %172 = vdwg.mxu0
    %v173 = vsel %vm79, %v54, 0
    %v175 = vsel %vm79, %v55, 0
    %v177 = vsel %vm79, %v56, 0
    %v179 = vsel %vm79, %v57, 0
    %181 = vmatprep.subr.mxu0 0.0
    %182 = vmatpush1.msra.mxu0 %v58
    %183 = vmatprep.subr.mxu0 0.0
    %184 = vmatpush1.msra.mxu0 %v59
    %185 = vmatprep.subr.mxu0 0.0
    %186 = vmatpush1.msra.mxu0 %v60
    %187 = vmatprep.subr.mxu0 0.0
    %188 = vmatpush1.msra.mxu0 %v61
    %189 = vmatprep.subr.mxu0 0.0
    %190 = vmatpush1.msra.mxu0 0.0
    %191 = vmatprep.subr.mxu0 0.0
    %192 = vmatpush1.msra.mxu0 0.0
    %193 = vmatprep.subr.mxu0 0.0
    %194 = vmatpush1.msra.mxu0 0.0
    %195 = vmatprep.subr.mxu0 0.0
    %196 = vmatpush1.msra.mxu0 0.0
    %197 = vmatprep.subr.mxu0 0.0
    %198 = vmatpush1.msra.mxu0 0.0
    %199 = vmatprep.subr.mxu0 0.0
    %200 = vmatpush1.msra.mxu0 0.0
    %201 = vmatprep.subr.mxu0 0.0
    %202 = vmatpush1.msra.mxu0 0.0
    %203 = vmatprep.subr.mxu0 0.0
    %204 = vmatpush1.msra.mxu0 0.0
    %205 = vmatprep.subr.mxu0 0.0
    %206 = vmatpush1.msra.mxu0 0.0
    %207 = vmatprep.subr.mxu0 0.0
    %208 = vmatpush1.msra.mxu0 0.0
    %209 = vmatprep.subr.mxu0 0.0
    %210 = vmatpush1.msra.mxu0 0.0
    %211 = vmatprep.subr.mxu0 0.0
    %212 = vmatpush1.msra.mxu0 0.0
    %213 = vmatprep.subr.mxu0 0.0
    %214 = vmatpush1.msra.mxu0 0.0
    %215 = vmatprep.subr.mxu0 0.0
    %216 = vmatpush1.msra.mxu0 0.0
    %217 = vmatprep.subr.mxu0 0.0
    %218 = vmatpush1.msra.mxu0 0.0
    %219 = vmatprep.subr.mxu0 0.0
    %220 = vmatpush1.msra.mxu0 0.0
    %221 = vmatprep.subr.mxu0 0.0
    %222 = vmatpush1.msra.mxu0 0.0
    %223 = vmatprep.subr.mxu0 0.0
    %224 = vmatpush1.msra.mxu0 0.0
    %225 = vmatprep.subr.mxu0 0.0
    %226 = vmatpush1.msra.mxu0 0.0
    %227 = vmatprep.subr.mxu0 0.0
    %228 = vmatpush1.msra.mxu0 0.0
    %229 = vmatprep.subr.mxu0 0.0
    %230 = vmatpush1.msra.mxu0 0.0
    %231 = vmatprep.subr.mxu0 0.0
    %232 = vmatpush1.msra.mxu0 0.0
    %233 = vmatprep.subr.mxu0 0.0
    %234 = vmatpush1.msra.mxu0 0.0
    %235 = vmatprep.subr.mxu0 0.0
    %236 = vmatpush1.msra.mxu0 0.0
    %237 = vmatprep.subr.mxu0 0.0
    %238 = vmatpush1.msra.mxu0 0.0
    %239 = vmatprep.subr.mxu0 0.0
    %240 = vmatpush1.msra.mxu0 0.0
    %241 = vmatprep.subr.mxu0 0.0
    %242 = vmatpush1.msra.mxu0 0.0
    %243 = vmatprep.subr.mxu0 0.0
    %244 = vmatpush1.msra.mxu0 0.0
    %245 = vmatprep.mubr.f32.mxu0 0.0
    %246 = vmatmul.mubr.f32.gmra.mrb[0].mxu0 %v173
    %v247 = vpop.f32.mrb[0].mxu0
    %v248 = vadd.f32 %v155, %v247
    %v249 = vpop.f32.mrb[0].mxu0
    %250 = vmatprep.mubr.f32.mxu0 0.0
    %251 = vmatmul.mubr.f32.gmra.mrb[0].mxu0 %v175
    %v252 = vpop.f32.mrb[0].mxu0
    %v253 = vadd.f32 %v160, %v252
    %v254 = vpop.f32.mrb[0].mxu0
    %255 = vmatprep.mubr.f32.mxu0 0.0
    %256 = vmatmul.mubr.f32.gmra.mrb[0].mxu0 %v177
    %v257 = vpop.f32.mrb[0].mxu0
    %v258 = vadd.f32 %v165, %v257
    %v259 = vpop.f32.mrb[0].mxu0
    %260 = vmatprep.mubr.f32.mxu0 0.0
    %261 = vmatmul.mubr.f32.gmra.mrb[0].mxu0 %v179
    %v262 = vpop.f32.mrb[0].mxu0
    %v263 = vadd.f32 %v170, %v262
    %v264 = vpop.f32.mrb[0].mxu0
    %265 = vdwg.mxu0
    %s266 = scalar_lea.vmem %s1, 64
    %v267 = vld [vmem:[%s266] sm:$0xff]
    %v268 = vld [vmem:[%s266 + $0x8] sm:$0xff]
    %v269 = vld [vmem:[%s266 + $0x10] sm:$0xff]
    %v270 = vld [vmem:[%s266 + $0x18] sm:$0xff]
    %vm271 = vcmask 1045504
    %v272 = vrot.slane %v54, 2
    %v273 = vrot.slane %v55, 2
    %v274 = vsel %vm271, %v272, %v273
    %v275 = vrot.slane %v56, 2
    %v276 = vsel %vm271, %v273, %v275
    %v277 = vrot.slane %v57, 2
    %v278 = vsel %vm271, %v275, %v277
    %v279 = vsel %vm79, %v274, 0
    %v281 = vsel %vm79, %v276, 0
    %v283 = vsel %vm79, %v278, 0
    %v285 = vsel %vm79, %v277, 0
    %287 = vmatprep.subr.mxu0 0.0
    %288 = vmatpush1.msra.mxu0 %v267
    %289 = vmatprep.subr.mxu0 0.0
    %290 = vmatpush1.msra.mxu0 %v268
    %291 = vmatprep.subr.mxu0 0.0
    %292 = vmatpush1.msra.mxu0 %v269
    %293 = vmatprep.subr.mxu0 0.0
    %294 = vmatpush1.msra.mxu0 %v270
    %295 = vmatprep.subr.mxu0 0.0
    %296 = vmatpush1.msra.mxu0 0.0
    %297 = vmatprep.subr.mxu0 0.0
    %298 = vmatpush1.msra.mxu0 0.0
    %299 = vmatprep.subr.mxu0 0.0
    %300 = vmatpush1.msra.mxu0 0.0
    %301 = vmatprep.subr.mxu0 0.0
    %302 = vmatpush1.msra.mxu0 0.0
    %303 = vmatprep.subr.mxu0 0.0
    %304 = vmatpush1.msra.mxu0 0.0
    %305 = vmatprep.subr.mxu0 0.0
    %306 = vmatpush1.msra.mxu0 0.0
    %307 = vmatprep.subr.mxu0 0.0
    %308 = vmatpush1.msra.mxu0 0.0
    %309 = vmatprep.subr.mxu0 0.0
    %310 = vmatpush1.msra.mxu0 0.0
    %311 = vmatprep.subr.mxu0 0.0
    %312 = vmatpush1.msra.mxu0 0.0
    %313 = vmatprep.subr.mxu0 0.0
    %314 = vmatpush1.msra.mxu0 0.0
    %315 = vmatprep.subr.mxu0 0.0
    %316 = vmatpush1.msra.mxu0 0.0
    %317 = vmatprep.subr.mxu0 0.0
    %318 = vmatpush1.msra.mxu0 0.0
    %319 = vmatprep.subr.mxu0 0.0
    %320 = vmatpush1.msra.mxu0 0.0
    %321 = vmatprep.subr.mxu0 0.0
    %322 = vmatpush1.msra.mxu0 0.0
    %323 = vmatprep.subr.mxu0 0.0
    %324 = vmatpush1.msra.mxu0 0.0
    %325 = vmatprep.subr.mxu0 0.0
    %326 = vmatpush1.msra.mxu0 0.0
    %327 = vmatprep.subr.mxu0 0.0
    %328 = vmatpush1.msra.mxu0 0.0
    %329 = vmatprep.subr.mxu0 0.0
    %330 = vmatpush1.msra.mxu0 0.0
    %331 = vmatprep.subr.mxu0 0.0
    %332 = vmatpush1.msra.mxu0 0.0
    %333 = vmatprep.subr.mxu0 0.0
    %334 = vmatpush1.msra.mxu0 0.0
    %335 = vmatprep.subr.mxu0 0.0
    %336 = vmatpush1.msra.mxu0 0.0
    %337 = vmatprep.subr.mxu0 0.0
    %338 = vmatpush1.msra.mxu0 0.0
    %339 = vmatprep.subr.mxu0 0.0
    %340 = vmatpush1.msra.mxu0 0.0
    %341 = vmatprep.subr.mxu0 0.0
    %342 = vmatpush1.msra.mxu0 0.0
    %343 = vmatprep.subr.mxu0 0.0
    %344 = vmatpush1.msra.mxu0 0.0
    %345 = vmatprep.subr.mxu0 0.0
    %346 = vmatpush1.msra.mxu0 0.0
    %347 = vmatprep.subr.mxu0 0.0
    %348 = vmatpush1.msra.mxu0 0.0
    %349 = vmatprep.subr.mxu0 0.0
    %350 = vmatpush1.msra.mxu0 0.0
    %351 = vmatprep.mubr.f32.mxu0 0.0
    %352 = vmatmul.mubr.f32.gmra.mrb[0].mxu0 %v279
    %v353 = vpop.f32.mrb[0].mxu0
    %v354 = vadd.f32 0.0, %v353
    %v355 = vpop.f32.mrb[0].mxu0
    %356 = vmatprep.mubr.f32.mxu0 0.0
    %357 = vmatmul.mubr.f32.gmra.mrb[0].mxu0 %v281
    %v358 = vpop.f32.mrb[0].mxu0
    %v359 = vadd.f32 0.0, %v358
    %v360 = vpop.f32.mrb[0].mxu0
    %361 = vmatprep.mubr.f32.mxu0 0.0
    %362 = vmatmul.mubr.f32.gmra.mrb[0].mxu0 %v283
    %v363 = vpop.f32.mrb[0].mxu0
    %v364 = vadd.f32 0.0, %v363
    %v365 = vpop.f32.mrb[0].mxu0
    %366 = vmatprep.mubr.f32.mxu0 0.0
    %367 = vmatmul.mubr.f32.gmra.mrb[0].mxu0 %v285
    %v368 = vpop.f32.mrb[0].mxu0
    %v369 = vadd.f32 0.0, %v368
    %v370 = vpop.f32.mrb[0].mxu0
    %371 = vdwg.mxu0
    %v372 = vadd.f32 %v248, %v354
    %v373 = vadd.f32 %v253, %v359
    %v374 = vadd.f32 %v258, %v364
    %v375 = vadd.f32 %v263, %v369
    %v376 = vld [vmem:[%s2] sm:$0x1]
    %v378 = vlaneseq
    %v379 = vshrl.u32 %v378, 7
    %v380 = vsub.s32 0, %v379
    %v381 = vrot.slane %v376, %v380
    %v383 = vadd.f32 %v372, %v381
    %v384 = vadd.f32 %v373, %v381
    %v385 = vadd.f32 %v374, %v381
    %v386 = vadd.f32 %v375, %v381
    %v387 = vmax.f32 %v383, 0.0
    %v388 = vmax.f32 %v384, 0.0
    %v389 = vmax.f32 %v385, 0.0
    %v390 = vmax.f32 %v386, 0.0
    %v391 = vld [vmem:[%s3] sm:$0xff]
    %v392 = vld [vmem:[%s3 + $0x8] sm:$0xff]
    %v393 = vld [vmem:[%s3 + $0x10] sm:$0xff]
    %v394 = vld [vmem:[%s3 + $0x18] sm:$0xff]
    %v395 = vld [vmem:[%s3 + $0x20] sm:$0xff]
    %v396 = vld [vmem:[%s3 + $0x28] sm:$0xff]
    %v397 = vld [vmem:[%s3 + $0x30] sm:$0xff]
    %v398 = vld [vmem:[%s3 + $0x38] sm:$0xf]
    %v399 = vld [vmem:[%s4] sm:$0x1]
    %v401 = vlaneseq
    %v402 = vshrl.u32 %v401, 7
    %v403 = vsub.s32 0, %v402
    %v404 = vrot.slane %v399, %v403
    %vm406 = vcmask 490496
    %v408 = vsel %vm406, %v387, 0
    %v411 = vsel %vm406, %v388, 0
    %v414 = vsel %vm406, %v389, 0
    %v417 = vsel %vm406, %v390, 0
    %vm419 = vcmask 1043456
    %v421 = vsel %vm419, %v398, 0
    %423 = vmatprep.subr.mxu0 0.0
    %424 = vmatpush1.msra.mxu0 %v391
    %425 = vmatprep.subr.mxu0 0.0
    %426 = vmatpush1.msra.mxu0 %v392
    %427 = vmatprep.subr.mxu0 0.0
    %428 = vmatpush1.msra.mxu0 %v393
    %429 = vmatprep.subr.mxu0 0.0
    %430 = vmatpush1.msra.mxu0 %v394
    %431 = vmatprep.subr.mxu0 0.0
    %432 = vmatpush1.msra.mxu0 %v395
    %433 = vmatprep.subr.mxu0 0.0
    %434 = vmatpush1.msra.mxu0 %v396
    %435 = vmatprep.subr.mxu0 0.0
    %436 = vmatpush1.msra.mxu0 %v397
    %437 = vmatprep.subr.mxu0 0.0
    %438 = vmatpush1.msra.mxu0 %v421
    %439 = vmatprep.subr.mxu0 0.0
    %440 = vmatpush1.msra.mxu0 0.0
    %441 = vmatprep.subr.mxu0 0.0
    %442 = vmatpush1.msra.mxu0 0.0
    %443 = vmatprep.subr.mxu0 0.0
    %444 = vmatpush1.msra.mxu0 0.0
    %445 = vmatprep.subr.mxu0 0.0
    %446 = vmatpush1.msra.mxu0 0.0
    %447 = vmatprep.subr.mxu0 0.0
    %448 = vmatpush1.msra.mxu0 0.0
    %449 = vmatprep.subr.mxu0 0.0
    %450 = vmatpush1.msra.mxu0 0.0
    %451 = vmatprep.subr.mxu0 0.0
    %452 = vmatpush1.msra.mxu0 0.0
    %453 = vmatprep.subr.mxu0 0.0
    %454 = vmatpush1.msra.mxu0 0.0
    %455 = vmatprep.subr.mxu0 0.0
    %456 = vmatpush1.msra.mxu0 0.0
    %457 = vmatprep.subr.mxu0 0.0
    %458 = vmatpush1.msra.mxu0 0.0
    %459 = vmatprep.subr.mxu0 0.0
    %460 = vmatpush1.msra.mxu0 0.0
    %461 = vmatprep.subr.mxu0 0.0
    %462 = vmatpush1.msra.mxu0 0.0
    %463 = vmatprep.subr.mxu0 0.0
    %464 = vmatpush1.msra.mxu0 0.0
    %465 = vmatprep.subr.mxu0 0.0
    %466 = vmatpush1.msra.mxu0 0.0
    %467 = vmatprep.subr.mxu0 0.0
    %468 = vmatpush1.msra.mxu0 0.0
    %469 = vmatprep.subr.mxu0 0.0
    %470 = vmatpush1.msra.mxu0 0.0
    %471 = vmatprep.subr.mxu0 0.0
    %472 = vmatpush1.msra.mxu0 0.0
    %473 = vmatprep.subr.mxu0 0.0
    %474 = vmatpush1.msra.mxu0 0.0
    %475 = vmatprep.subr.mxu0 0.0
    %476 = vmatpush1.msra.mxu0 0.0
    %477 = vmatprep.subr.mxu0 0.0
    %478 = vmatpush1.msra.mxu0 0.0
    %479 = vmatprep.subr.mxu0 0.0
    %480 = vmatpush1.msra.mxu0 0.0
    %481 = vmatprep.subr.mxu0 0.0
    %482 = vmatpush1.msra.mxu0 0.0
    %483 = vmatprep.subr.mxu0 0.0
    %484 = vmatpush1.msra.mxu0 0.0
    %485 = vmatprep.subr.mxu0 0.0
    %486 = vmatpush1.msra.mxu0 0.0
    %487 = vmatprep.mubr.f32.mxu0 0.0
    %488 = vmatmul.mubr.f32.gmra.mrb[0].mxu0 %v408
    %v489 = vpop.f32.mrb[0].mxu0
    %v490 = vadd.f32 %v404, %v489
    %v491 = vpop.f32.mrb[0].mxu0
    %492 = vmatprep.mubr.f32.mxu0 0.0
    %493 = vmatmul.mubr.f32.gmra.mrb[0].mxu0 %v411
    %v494 = vpop.f32.mrb[0].mxu0
    %v495 = vadd.f32 %v404, %v494
    %v496 = vpop.f32.mrb[0].mxu0
    %497 = vmatprep.mubr.f32.mxu0 0.0
    %498 = vmatmul.mubr.f32.gmra.mrb[0].mxu0 %v414
    %v499 = vpop.f32.mrb[0].mxu0
    %v500 = vadd.f32 %v404, %v499
    %v501 = vpop.f32.mrb[0].mxu0
    %502 = vmatprep.mubr.f32.mxu0 0.0
    %503 = vmatmul.mubr.f32.gmra.mrb[0].mxu0 %v417
    %v504 = vpop.f32.mrb[0].mxu0
    %v505 = vadd.f32 %v404, %v504
    %v506 = vpop.f32.mrb[0].mxu0
    %507 = vdwg.mxu0
    %v508 = vmax.f32 %v490, 0.0
    %v509 = vmax.f32 %v495, 0.0
    %v510 = vmax.f32 %v500, 0.0
    %v511 = vmax.f32 %v505, 0.0
    %v512 = vld [vmem:[%s5] sm:$0xff]
    %v513 = vld [vmem:[%s5 + $0x8] sm:$0xff]
    %v514 = vld [vmem:[%s5 + $0x10] sm:$0xff]
    %v515 = vld [vmem:[%s5 + $0x18] sm:$0xff]
    %v516 = vld [vmem:[%s5 + $0x20] sm:$0xff]
    %v517 = vld [vmem:[%s5 + $0x28] sm:$0xff]
    %v518 = vld [vmem:[%s5 + $0x30] sm:$0xff]
    %v519 = vld [vmem:[%s5 + $0x38] sm:$0xff]
    %v520 = vld [vmem:[%s5 + $0x40] sm:$0xff]
    %v521 = vld [vmem:[%s5 + $0x48] sm:$0xff]
    %v522 = vld [vmem:[%s5 + $0x50] sm:$0xff]
    %v523 = vld [vmem:[%s5 + $0x58] sm:$0xff]
    %v524 = vld [vmem:[%s5 + $0x60] sm:$0xff]
    %v525 = vld [vmem:[%s5 + $0x68] sm:$0xff]
    %v526 = vld [vmem:[%s5 + $0x70] sm:$0xff]
    %vm527 = vcmask 982016
    %v529 = vsel %vm527, %v508, 0
    %v532 = vsel %vm527, %v509, 0
    %v535 = vsel %vm527, %v510, 0
    %v538 = vsel %vm527, %v511, 0
    %540 = vmatprep.subr.mxu0 0.0
    %541 = vmatpush1.msra.mxu0 %v512
    %542 = vmatprep.subr.mxu0 0.0
    %543 = vmatpush1.msra.mxu0 %v513
    %544 = vmatprep.subr.mxu0 0.0
    %545 = vmatpush1.msra.mxu0 %v514
    %546 = vmatprep.subr.mxu0 0.0
    %547 = vmatpush1.msra.mxu0 %v515
    %548 = vmatprep.subr.mxu0 0.0
    %549 = vmatpush1.msra.mxu0 %v516
    %550 = vmatprep.subr.mxu0 0.0
    %551 = vmatpush1.msra.mxu0 %v517
    %552 = vmatprep.subr.mxu0 0.0
    %553 = vmatpush1.msra.mxu0 %v518
    %554 = vmatprep.subr.mxu0 0.0
    %555 = vmatpush1.msra.mxu0 %v519
    %556 = vmatprep.subr.mxu0 0.0
    %557 = vmatpush1.msra.mxu0 %v520
    %558 = vmatprep.subr.mxu0 0.0
    %559 = vmatpush1.msra.mxu0 %v521
    %560 = vmatprep.subr.mxu0 0.0
    %561 = vmatpush1.msra.mxu0 %v522
    %562 = vmatprep.subr.mxu0 0.0
    %563 = vmatpush1.msra.mxu0 %v523
    %564 = vmatprep.subr.mxu0 0.0
    %565 = vmatpush1.msra.mxu0 %v524
    %566 = vmatprep.subr.mxu0 0.0
    %567 = vmatpush1.msra.mxu0 %v525
    %568 = vmatprep.subr.mxu0 0.0
    %569 = vmatpush1.msra.mxu0 %v526
    %570 = vmatprep.subr.mxu0 0.0
    %571 = vmatpush1.msra.mxu0 0.0
    %572 = vmatprep.subr.mxu0 0.0
    %573 = vmatpush1.msra.mxu0 0.0
    %574 = vmatprep.subr.mxu0 0.0
    %575 = vmatpush1.msra.mxu0 0.0
    %576 = vmatprep.subr.mxu0 0.0
    %577 = vmatpush1.msra.mxu0 0.0
    %578 = vmatprep.subr.mxu0 0.0
    %579 = vmatpush1.msra.mxu0 0.0
    %580 = vmatprep.subr.mxu0 0.0
    %581 = vmatpush1.msra.mxu0 0.0
    %582 = vmatprep.subr.mxu0 0.0
    %583 = vmatpush1.msra.mxu0 0.0
    %584 = vmatprep.subr.mxu0 0.0
    %585 = vmatpush1.msra.mxu0 0.0
    %586 = vmatprep.subr.mxu0 0.0
    %587 = vmatpush1.msra.mxu0 0.0
    %588 = vmatprep.subr.mxu0 0.0
    %589 = vmatpush1.msra.mxu0 0.0
    %590 = vmatprep.subr.mxu0 0.0
    %591 = vmatpush1.msra.mxu0 0.0
    %592 = vmatprep.subr.mxu0 0.0
    %593 = vmatpush1.msra.mxu0 0.0
    %594 = vmatprep.subr.mxu0 0.0
    %595 = vmatpush1.msra.mxu0 0.0
    %596 = vmatprep.subr.mxu0 0.0
    %597 = vmatpush1.msra.mxu0 0.0
    %598 = vmatprep.subr.mxu0 0.0
    %599 = vmatpush1.msra.mxu0 0.0
    %600 = vmatprep.subr.mxu0 0.0
    %601 = vmatpush1.msra.mxu0 0.0
    %602 = vmatprep.subr.mxu0 0.0
    %603 = vmatpush1.msra.mxu0 0.0
    %604 = vmatprep.mubr.f32.mxu0 0.0
    %605 = vmatmul.mubr.f32.gmra.mrb[0].mxu0 %v529
    %v606 = vpop.f32.mrb[0].mxu0
    %v607 = vadd.f32 0.0, %v606
    %v608 = vpop.f32.mrb[0].mxu0
    %609 = vmatprep.mubr.f32.mxu0 0.0
    %610 = vmatmul.mubr.f32.gmra.mrb[0].mxu0 %v532
    %v611 = vpop.f32.mrb[0].mxu0
    %v612 = vadd.f32 0.0, %v611
    %v613 = vpop.f32.mrb[0].mxu0
    %614 = vmatprep.mubr.f32.mxu0 0.0
    %615 = vmatmul.mubr.f32.gmra.mrb[0].mxu0 %v535
    %v616 = vpop.f32.mrb[0].mxu0
    %v617 = vadd.f32 0.0, %v616
    %v618 = vpop.f32.mrb[0].mxu0
    %619 = vmatprep.mubr.f32.mxu0 0.0
    %620 = vmatmul.mubr.f32.gmra.mrb[0].mxu0 %v538
    %v621 = vpop.f32.mrb[0].mxu0
    %v622 = vadd.f32 0.0, %v621
    %v623 = vpop.f32.mrb[0].mxu0
    %624 = vdwg.mxu0
    %v625 = vld [vmem:[%s6] sm:$0xff]
    %v626 = vld [vmem:[%s6 + $0x8] sm:$0xff]
    %v627 = vld [vmem:[%s6 + $0x10] sm:$0xff]
    %v628 = vld [vmem:[%s6 + $0x18] sm:$0xff]
    %v629 = vld [vmem:[%s6 + $0x20] sm:$0xff]
    %v630 = vld [vmem:[%s6 + $0x28] sm:$0xff]
    %v631 = vld [vmem:[%s6 + $0x30] sm:$0xff]
    %v632 = vld [vmem:[%s6 + $0x38] sm:$0xff]
    %v633 = vld [vmem:[%s6 + $0x40] sm:$0xff]
    %v634 = vld [vmem:[%s6 + $0x48] sm:$0xff]
    %v635 = vld [vmem:[%s6 + $0x50] sm:$0xff]
    %v636 = vld [vmem:[%s6 + $0x58] sm:$0xff]
    %v637 = vld [vmem:[%s6 + $0x60] sm:$0xff]
    %v638 = vld [vmem:[%s6 + $0x68] sm:$0xff]
    %v639 = vld [vmem:[%s6 + $0x70] sm:$0xff]
    %640 = vmatprep.subr.mxu0 0.0
    %641 = vmatpush1.msra.mxu0 %v625
    %642 = vmatprep.subr.mxu0 0.0
    %643 = vmatpush1.msra.mxu0 %v626
    %644 = vmatprep.subr.mxu0 0.0
    %645 = vmatpush1.msra.mxu0 %v627
    %646 = vmatprep.subr.mxu0 0.0
    %647 = vmatpush1.msra.mxu0 %v628
    %648 = vmatprep.subr.mxu0 0.0
    %649 = vmatpush1.msra.mxu0 %v629
    %650 = vmatprep.subr.mxu0 0.0
    %651 = vmatpush1.msra.mxu0 %v630
    %652 = vmatprep.subr.mxu0 0.0
    %653 = vmatpush1.msra.mxu0 %v631
    %654 = vmatprep.subr.mxu0 0.0
    %655 = vmatpush1.msra.mxu0 %v632
    %656 = vmatprep.subr.mxu0 0.0
    %657 = vmatpush1.msra.mxu0 %v633
    %658 = vmatprep.subr.mxu0 0.0
    %659 = vmatpush1.msra.mxu0 %v634
    %660 = vmatprep.subr.mxu0 0.0
    %661 = vmatpush1.msra.mxu0 %v635
    %662 = vmatprep.subr.mxu0 0.0
    %663 = vmatpush1.msra.mxu0 %v636
    %664 = vmatprep.subr.mxu0 0.0
    %665 = vmatpush1.msra.mxu0 %v637
    %666 = vmatprep.subr.mxu0 0.0
    %667 = vmatpush1.msra.mxu0 %v638
    %668 = vmatprep.subr.mxu0 0.0
    %669 = vmatpush1.msra.mxu0 %v639
    %670 = vmatprep.subr.mxu0 0.0
    %671 = vmatpush1.msra.mxu0 0.0
    %672 = vmatprep.subr.mxu0 0.0
    %673 = vmatpush1.msra.mxu0 0.0
    %674 = vmatprep.subr.mxu0 0.0
    %675 = vmatpush1.msra.mxu0 0.0
    %676 = vmatprep.subr.mxu0 0.0
    %677 = vmatpush1.msra.mxu0 0.0
    %678 = vmatprep.subr.mxu0 0.0
    %679 = vmatpush1.msra.mxu0 0.0
    %680 = vmatprep.subr.mxu0 0.0
    %681 = vmatpush1.msra.mxu0 0.0
    %682 = vmatprep.subr.mxu0 0.0
    %683 = vmatpush1.msra.mxu0 0.0
    %684 = vmatprep.subr.mxu0 0.0
    %685 = vmatpush1.msra.mxu0 0.0
    %686 = vmatprep.subr.mxu0 0.0
    %687 = vmatpush1.msra.mxu0 0.0
    %688 = vmatprep.subr.mxu0 0.0
    %689 = vmatpush1.msra.mxu0 0.0
    %690 = vmatprep.subr.mxu0 0.0
    %691 = vmatpush1.msra.mxu0 0.0
    %692 = vmatprep.subr.mxu0 0.0
    %693 = vmatpush1.msra.mxu0 0.0
    %694 = vmatprep.subr.mxu0 0.0
    %695 = vmatpush1.msra.mxu0 0.0
    %696 = vmatprep.subr.mxu0 0.0
    %697 = vmatpush1.msra.mxu0 0.0
    %698 = vmatprep.subr.mxu0 0.0
    %699 = vmatpush1.msra.mxu0 0.0
    %700 = vmatprep.subr.mxu0 0.0
    %701 = vmatpush1.msra.mxu0 0.0
    %702 = vmatprep.subr.mxu0 0.0
    %703 = vmatpush1.msra.mxu0 0.0
    %704 = vmatprep.mubr.f32.mxu0 0.0
    %705 = vmatmul.mubr.f32.gmra.mrb[0].mxu0 %v529
    %v706 = vpop.f32.mrb[0].mxu0
    %v707 = vadd.f32 0.0, %v706
    %v708 = vpop.f32.mrb[0].mxu0
    %709 = vmatprep.mubr.f32.mxu0 0.0
    %710 = vmatmul.mubr.f32.gmra.mrb[0].mxu0 %v532
    %v711 = vpop.f32.mrb[0].mxu0
    %v712 = vadd.f32 0.0, %v711
    %v713 = vpop.f32.mrb[0].mxu0
    %714 = vmatprep.mubr.f32.mxu0 0.0
    %715 = vmatmul.mubr.f32.gmra.mrb[0].mxu0 %v535
    %v716 = vpop.f32.mrb[0].mxu0
    %v717 = vadd.f32 0.0, %v716
    %v718 = vpop.f32.mrb[0].mxu0
    %719 = vmatprep.mubr.f32.mxu0 0.0
    %720 = vmatmul.mubr.f32.gmra.mrb[0].mxu0 %v538
    %v721 = vpop.f32.mrb[0].mxu0
    %v722 = vadd.f32 0.0, %v721
    %v723 = vpop.f32.mrb[0].mxu0
    %724 = vdwg.mxu0
    %v725 = vmax.f32 %v607, %v707
    %v726 = vmax.f32 %v612, %v712
    %v727 = vmax.f32 %v617, %v717
    %v728 = vmax.f32 %v622, %v722
    %v733 = vrot.slane %v725, 1
    %v734 = vrot.slane %v726, 1
    %v735 = vsel %vm71, %v733, %v734
    %v736 = vrot.slane %v727, 1
    %v737 = vsel %vm71, %v734, %v736
    %v738 = vrot.slane %v728, 1
    %v739 = vsel %vm71, %v736, %v738
    %v744 = vmax.f32 %v725, %v735
    %v745 = vmax.f32 %v726, %v737
    %v746 = vmax.f32 %v727, %v739
    %v747 = vmax.f32 %v728, %v738
    %v748 = vld [vmem:[%s7] sm:$0xff]
    %v749 = vld [vmem:[%s7 + $0x8] sm:$0xff]
    %v750 = vld [vmem:[%s7 + $0x10] sm:$0xff]
    %v751 = vld [vmem:[%s7 + $0x18] sm:$0xff]
    %v752 = vld [vmem:[%s7 + $0x20] sm:$0xff]
    %v753 = vld [vmem:[%s7 + $0x28] sm:$0xff]
    %v754 = vld [vmem:[%s7 + $0x30] sm:$0xff]
    %s755 = scalar_lea.vmem %s7, 56
    %v756 = vld [vmem:[%s755] sm:$0xff]
    %v757 = vld [vmem:[%s755 + $0x8] sm:$0xff]
    %v758 = vld [vmem:[%s755 + $0x10] sm:$0xff]
    %v759 = vld [vmem:[%s755 + $0x18] sm:$0xff]
    %v760 = vld [vmem:[%s755 + $0x20] sm:$0xff]
    %v761 = vld [vmem:[%s755 + $0x28] sm:$0xff]
    %v762 = vld [vmem:[%s755 + $0x30] sm:$0xff]
    %v767 = vrot.slane %v744, 2
    %v768 = vrot.slane %v745, 2
    %v769 = vsel %vm271, %v767, %v768
    %v770 = vrot.slane %v746, 2
    %v771 = vsel %vm271, %v768, %v770
    %v772 = vrot.slane %v747, 2
    %v773 = vsel %vm271, %v770, %v772
    %vm774 = vcmask 457728
    %v775 = vsel %vm774, %v769, 0
    %v777 = vsel %vm774, %v771, 0
    %v779 = vsel %vm774, %v773, 0
    %v781 = vsel %vm774, %v772, 0
    %783 = vmatprep.subr.mxu0 0.0
    %784 = vmatpush1.msra.mxu0 %v756
    %785 = vmatprep.subr.mxu0 0.0
    %786 = vmatpush1.msra.mxu0 %v757
    %787 = vmatprep.subr.mxu0 0.0
    %788 = vmatpush1.msra.mxu0 %v758
    %789 = vmatprep.subr.mxu0 0.0
    %790 = vmatpush1.msra.mxu0 %v759
    %791 = vmatprep.subr.mxu0 0.0
    %792 = vmatpush1.msra.mxu0 %v760
    %793 = vmatprep.subr.mxu0 0.0
    %794 = vmatpush1.msra.mxu0 %v761
    %795 = vmatprep.subr.mxu0 0.0
    %796 = vmatpush1.msra.mxu0 %v762
    %797 = vmatprep.subr.mxu0 0.0
    %798 = vmatpush1.msra.mxu0 0.0
    %799 = vmatprep.subr.mxu0 0.0
    %800 = vmatpush1.msra.mxu0 0.0
    %801 = vmatprep.subr.mxu0 0.0
    %802 = vmatpush1.msra.mxu0 0.0
    %803 = vmatprep.subr.mxu0 0.0
    %804 = vmatpush1.msra.mxu0 0.0
    %805 = vmatprep.subr.mxu0 0.0
    %806 = vmatpush1.msra.mxu0 0.0
    %807 = vmatprep.subr.mxu0 0.0
    %808 = vmatpush1.msra.mxu0 0.0
    %809 = vmatprep.subr.mxu0 0.0
    %810 = vmatpush1.msra.mxu0 0.0
    %811 = vmatprep.subr.mxu0 0.0
    %812 = vmatpush1.msra.mxu0 0.0
    %813 = vmatprep.subr.mxu0 0.0
    %814 = vmatpush1.msra.mxu0 0.0
    %815 = vmatprep.subr.mxu0 0.0
    %816 = vmatpush1.msra.mxu0 0.0
    %817 = vmatprep.subr.mxu0 0.0
    %818 = vmatpush1.msra.mxu0 0.0
    %819 = vmatprep.subr.mxu0 0.0
    %820 = vmatpush1.msra.mxu0 0.0
    %821 = vmatprep.subr.mxu0 0.0
    %822 = vmatpush1.msra.mxu0 0.0
    %823 = vmatprep.subr.mxu0 0.0
    %824 = vmatpush1.msra.mxu0 0.0
    %825 = vmatprep.subr.mxu0 0.0
    %826 = vmatpush1.msra.mxu0 0.0
    %827 = vmatprep.subr.mxu0 0.0
    %828 = vmatpush1.msra.mxu0 0.0
    %829 = vmatprep.subr.mxu0 0.0
    %830 = vmatpush1.msra.mxu0 0.0
    %831 = vmatprep.subr.mxu0 0.0
    %832 = vmatpush1.msra.mxu0 0.0
    %833 = vmatprep.subr.mxu0 0.0
    %834 = vmatpush1.msra.mxu0 0.0
    %835 = vmatprep.subr.mxu0 0.0
    %836 = vmatpush1.msra.mxu0 0.0
    %837 = vmatprep.subr.mxu0 0.0
    %838 = vmatpush1.msra.mxu0 0.0
    %839 = vmatprep.subr.mxu0 0.0
    %840 = vmatpush1.msra.mxu0 0.0
    %841 = vmatprep.subr.mxu0 0.0
    %842 = vmatpush1.msra.mxu0 0.0
    %843 = vmatprep.subr.mxu0 0.0
    %844 = vmatpush1.msra.mxu0 0.0
    %845 = vmatprep.subr.mxu0 0.0
    %846 = vmatpush1.msra.mxu0 0.0
    %847 = vmatprep.mubr.f32.mxu0 0.0
    %848 = vmatmul.mubr.f32.gmra.mrb[0].mxu0 %v775
    %v849 = vpop.f32.mrb[0].mxu0
    %v850 = vadd.f32 0.0, %v849
    %v851 = vpop.f32.mrb[0].mxu0
    %852 = vmatprep.mubr.f32.mxu0 0.0
    %853 = vmatmul.mubr.f32.gmra.mrb[0].mxu0 %v777
    %v854 = vpop.f32.mrb[0].mxu0
    %v855 = vadd.f32 0.0, %v854
    %v856 = vpop.f32.mrb[0].mxu0
    %857 = vmatprep.mubr.f32.mxu0 0.0
    %858 = vmatmul.mubr.f32.gmra.mrb[0].mxu0 %v779
    %v859 = vpop.f32.mrb[0].mxu0
    %v860 = vadd.f32 0.0, %v859
    %v861 = vpop.f32.mrb[0].mxu0
    %862 = vmatprep.mubr.f32.mxu0 0.0
    %863 = vmatmul.mubr.f32.gmra.mrb[0].mxu0 %v781
    %v864 = vpop.f32.mrb[0].mxu0
    %v865 = vadd.f32 0.0, %v864
    %v866 = vpop.f32.mrb[0].mxu0
    %867 = vdwg.mxu0
    %v868 = vsel %vm774, %v744, 0
    %v870 = vsel %vm774, %v745, 0
    %v872 = vsel %vm774, %v746, 0
    %v874 = vsel %vm774, %v747, 0
    %876 = vmatprep.subr.mxu0 0.0
    %877 = vmatpush1.msra.mxu0 %v748
    %878 = vmatprep.subr.mxu0 0.0
    %879 = vmatpush1.msra.mxu0 %v749
    %880 = vmatprep.subr.mxu0 0.0
    %881 = vmatpush1.msra.mxu0 %v750
    %882 = vmatprep.subr.mxu0 0.0
    %883 = vmatpush1.msra.mxu0 %v751
    %884 = vmatprep.subr.mxu0 0.0
    %885 = vmatpush1.msra.mxu0 %v752
    %886 = vmatprep.subr.mxu0 0.0
    %887 = vmatpush1.msra.mxu0 %v753
    %888 = vmatprep.subr.mxu0 0.0
    %889 = vmatpush1.msra.mxu0 %v754
    %890 = vmatprep.subr.mxu0 0.0
    %891 = vmatpush1.msra.mxu0 0.0
    %892 = vmatprep.subr.mxu0 0.0
    %893 = vmatpush1.msra.mxu0 0.0
    %894 = vmatprep.subr.mxu0 0.0
    %895 = vmatpush1.msra.mxu0 0.0
    %896 = vmatprep.subr.mxu0 0.0
    %897 = vmatpush1.msra.mxu0 0.0
    %898 = vmatprep.subr.mxu0 0.0
    %899 = vmatpush1.msra.mxu0 0.0
    %900 = vmatprep.subr.mxu0 0.0
    %901 = vmatpush1.msra.mxu0 0.0
    %902 = vmatprep.subr.mxu0 0.0
    %903 = vmatpush1.msra.mxu0 0.0
    %904 = vmatprep.subr.mxu0 0.0
    %905 = vmatpush1.msra.mxu0 0.0
    %906 = vmatprep.subr.mxu0 0.0
    %907 = vmatpush1.msra.mxu0 0.0
    %908 = vmatprep.subr.mxu0 0.0
    %909 = vmatpush1.msra.mxu0 0.0
    %910 = vmatprep.subr.mxu0 0.0
    %911 = vmatpush1.msra.mxu0 0.0
    %912 = vmatprep.subr.mxu0 0.0
    %913 = vmatpush1.msra.mxu0 0.0
    %914 = vmatprep.subr.mxu0 0.0
    %915 = vmatpush1.msra.mxu0 0.0
    %916 = vmatprep.subr.mxu0 0.0
    %917 = vmatpush1.msra.mxu0 0.0
    %918 = vmatprep.subr.mxu0 0.0
    %919 = vmatpush1.msra.mxu0 0.0
    %920 = vmatprep.subr.mxu0 0.0
    %921 = vmatpush1.msra.mxu0 0.0
    %922 = vmatprep.subr.mxu0 0.0
    %923 = vmatpush1.msra.mxu0 0.0
    %924 = vmatprep.subr.mxu0 0.0
    %925 = vmatpush1.msra.mxu0 0.0
    %926 = vmatprep.subr.mxu0 0.0
    %927 = vmatpush1.msra.mxu0 0.0
    %928 = vmatprep.subr.mxu0 0.0
    %929 = vmatpush1.msra.mxu0 0.0
    %930 = vmatprep.subr.mxu0 0.0
    %931 = vmatpush1.msra.mxu0 0.0
    %932 = vmatprep.subr.mxu0 0.0
    %933 = vmatpush1.msra.mxu0 0.0
    %934 = vmatprep.subr.mxu0 0.0
    %935 = vmatpush1.msra.mxu0 0.0
    %936 = vmatprep.subr.mxu0 0.0
    %937 = vmatpush1.msra.mxu0 0.0
    %938 = vmatprep.subr.mxu0 0.0
    %939 = vmatpush1.msra.mxu0 0.0
    %940 = vmatprep.mubr.f32.mxu0 0.0
    %941 = vmatmul.mubr.f32.gmra.mrb[0].mxu0 %v868
    %v942 = vpop.f32.mrb[0].mxu0
    %v943 = vadd.f32 %v850, %v942
    %v944 = vpop.f32.mrb[0].mxu0
    %945 = vmatprep.mubr.f32.mxu0 0.0
    %946 = vmatmul.mubr.f32.gmra.mrb[0].mxu0 %v870
    %v947 = vpop.f32.mrb[0].mxu0
    %v948 = vadd.f32 %v855, %v947
    %v949 = vpop.f32.mrb[0].mxu0
    %950 = vmatprep.mubr.f32.mxu0 0.0
    %951 = vmatmul.mubr.f32.gmra.mrb[0].mxu0 %v872
    %v952 = vpop.f32.mrb[0].mxu0
    %v953 = vadd.f32 %v860, %v952
    %v954 = vpop.f32.mrb[0].mxu0
    %955 = vmatprep.mubr.f32.mxu0 0.0
    %956 = vmatmul.mubr.f32.gmra.mrb[0].mxu0 %v874
    %v957 = vpop.f32.mrb[0].mxu0
    %v958 = vadd.f32 %v865, %v957
    %v959 = vpop.f32.mrb[0].mxu0
    %960 = vdwg.mxu0
    %s961 = scalar_lea.vmem %s7, 112
    %v962 = vld [vmem:[%s961] sm:$0xff]
    %v963 = vld [vmem:[%s961 + $0x8] sm:$0xff]
    %v964 = vld [vmem:[%s961 + $0x10] sm:$0xff]
    %v965 = vld [vmem:[%s961 + $0x18] sm:$0xff]
    %v966 = vld [vmem:[%s961 + $0x20] sm:$0xff]
    %v967 = vld [vmem:[%s961 + $0x28] sm:$0xff]
    %v968 = vld [vmem:[%s961 + $0x30] sm:$0xff]
    %v969 = vrot.slane %v744, 4
    %v970 = vrot.slane %v745, 4
    %v971 = vsel %vm419, %v969, %v970
    %v972 = vrot.slane %v746, 4
    %v973 = vsel %vm419, %v970, %v972
    %v974 = vrot.slane %v747, 4
    %v975 = vsel %vm419, %v972, %v974
    %v976 = vsel %vm774, %v971, 0
    %v978 = vsel %vm774, %v973, 0
    %v980 = vsel %vm774, %v975, 0
    %v982 = vsel %vm774, %v974, 0
    %984 = vmatprep.subr.mxu0 0.0
    %985 = vmatpush1.msra.mxu0 %v962
    %986 = vmatprep.subr.mxu0 0.0
    %987 = vmatpush1.msra.mxu0 %v963
    %988 = vmatprep.subr.mxu0 0.0
    %989 = vmatpush1.msra.mxu0 %v964
    %990 = vmatprep.subr.mxu0 0.0
    %991 = vmatpush1.msra.mxu0 %v965
    %992 = vmatprep.subr.mxu0 0.0
    %993 = vmatpush1.msra.mxu0 %v966
    %994 = vmatprep.subr.mxu0 0.0
    %995 = vmatpush1.msra.mxu0 %v967
    %996 = vmatprep.subr.mxu0 0.0
    %997 = vmatpush1.msra.mxu0 %v968
    %998 = vmatprep.subr.mxu0 0.0
    %999 = vmatpush1.msra.mxu0 0.0
    %1000 = vmatprep.subr.mxu0 0.0
    %1001 = vmatpush1.msra.mxu0 0.0
    %1002 = vmatprep.subr.mxu0 0.0
    %1003 = vmatpush1.msra.mxu0 0.0
    %1004 = vmatprep.subr.mxu0 0.0
    %1005 = vmatpush1.msra.mxu0 0.0
    %1006 = vmatprep.subr.mxu0 0.0
    %1007 = vmatpush1.msra.mxu0 0.0
    %1008 = vmatprep.subr.mxu0 0.0
    %1009 = vmatpush1.msra.mxu0 0.0
    %1010 = vmatprep.subr.mxu0 0.0
    %1011 = vmatpush1.msra.mxu0 0.0
    %1012 = vmatprep.subr.mxu0 0.0
    %1013 = vmatpush1.msra.mxu0 0.0
    %1014 = vmatprep.subr.mxu0 0.0
    %1015 = vmatpush1.msra.mxu0 0.0
    %1016 = vmatprep.subr.mxu0 0.0
    %1017 = vmatpush1.msra.mxu0 0.0
    %1018 = vmatprep.subr.mxu0 0.0
    %1019 = vmatpush1.msra.mxu0 0.0
    %1020 = vmatprep.subr.mxu0 0.0
    %1021 = vmatpush1.msra.mxu0 0.0
    %1022 = vmatprep.subr.mxu0 0.0
    %1023 = vmatpush1.msra.mxu0 0.0
    %1024 = vmatprep.subr.mxu0 0.0
    %1025 = vmatpush1.msra.mxu0 0.0
    %1026 = vmatprep.subr.mxu0 0.0
    %1027 = vmatpush1.msra.mxu0 0.0
    %1028 = vmatprep.subr.mxu0 0.0
    %1029 = vmatpush1.msra.mxu0 0.0
    %1030 = vmatprep.subr.mxu0 0.0
    %1031 = vmatpush1.msra.mxu0 0.0
    %1032 = vmatprep.subr.mxu0 0.0
    %1033 = vmatpush1.msra.mxu0 0.0
    %1034 = vmatprep.subr.mxu0 0.0
    %1035 = vmatpush1.msra.mxu0 0.0
    %1036 = vmatprep.subr.mxu0 0.0
    %1037 = vmatpush1.msra.mxu0 0.0
    %1038 = vmatprep.subr.mxu0 0.0
    %1039 = vmatpush1.msra.mxu0 0.0
    %1040 = vmatprep.subr.mxu0 0.0
    %1041 = vmatpush1.msra.mxu0 0.0
    %1042 = vmatprep.subr.mxu0 0.0
    %1043 = vmatpush1.msra.mxu0 0.0
    %1044 = vmatprep.subr.mxu0 0.0
    %1045 = vmatpush1.msra.mxu0 0.0
    %1046 = vmatprep.subr.mxu0 0.0
    %1047 = vmatpush1.msra.mxu0 0.0
    %1048 = vmatprep.mubr.f32.mxu0 0.0
    %1049 = vmatmul.mubr.f32.gmra.mrb[0].mxu0 %v976
    %v1050 = vpop.f32.mrb[0].mxu0
    %v1051 = vadd.f32 0.0, %v1050
    %v1052 = vpop.f32.mrb[0].mxu0
    %1053 = vmatprep.mubr.f32.mxu0 0.0
    %1054 = vmatmul.mubr.f32.gmra.mrb[0].mxu0 %v978
    %v1055 = vpop.f32.mrb[0].mxu0
    %v1056 = vadd.f32 0.0, %v1055
    %v1057 = vpop.f32.mrb[0].mxu0
    %1058 = vmatprep.mubr.f32.mxu0 0.0
    %1059 = vmatmul.mubr.f32.gmra.mrb[0].mxu0 %v980
    %v1060 = vpop.f32.mrb[0].mxu0
    %v1061 = vadd.f32 0.0, %v1060
    %v1062 = vpop.f32.mrb[0].mxu0
    %1063 = vmatprep.mubr.f32.mxu0 0.0
    %1064 = vmatmul.mubr.f32.gmra.mrb[0].mxu0 %v982
    %v1065 = vpop.f32.mrb[0].mxu0
    %v1066 = vadd.f32 0.0, %v1065
    %v1067 = vpop.f32.mrb[0].mxu0
    %1068 = vdwg.mxu0
    %v1069 = vadd.f32 %v943, %v1051
    %v1070 = vadd.f32 %v948, %v1056
    %v1071 = vadd.f32 %v953, %v1061
    %v1072 = vadd.f32 %v958, %v1066
    %v1073 = vld [vmem:[%s8] sm:$0x1]
    %v1075 = vlaneseq
    %v1076 = vshrl.u32 %v1075, 7
    %v1077 = vsub.s32 0, %v1076
    %v1078 = vrot.slane %v1073, %v1077
    %v1080 = vadd.f32 %v1069, %v1078
    %v1081 = vadd.f32 %v1070, %v1078
    %v1082 = vadd.f32 %v1071, %v1078
    %v1083 = vadd.f32 %v1072, %v1078
    %v1084 = vmax.f32 %v1080, 0.0
    %v1085 = vmax.f32 %v1081, 0.0
    %v1086 = vmax.f32 %v1082, 0.0
    %v1087 = vmax.f32 %v1083, 0.0
    %v1088 = vld [vmem:[%s9] sm:$0xff]
    %v1089 = vld [vmem:[%s9 + $0x8] sm:$0xff]
    %v1090 = vld [vmem:[%s9 + $0x10] sm:$0xff]
    %v1091 = vld [vmem:[%s10] sm:$0x1]
    %v1093 = vlaneseq
    %v1094 = vshrl.u32 %v1093, 7
    %v1095 = vsub.s32 0, %v1094
    %v1096 = vrot.slane %v1091, %v1095
    %vm1098 = vcmask 195584
    %v1100 = vsel %vm1098, %v1084, 0
    %v1103 = vsel %vm1098, %v1085, 0
    %v1106 = vsel %vm1098, %v1086, 0
    %v1109 = vsel %vm1098, %v1087, 0
    %1111 = vmatprep.subr.mxu0 0.0
    %1112 = vmatpush1.msra.mxu0 %v1088
    %1113 = vmatprep.subr.mxu0 0.0
    %1114 = vmatpush1.msra.mxu0 %v1089
    %1115 = vmatprep.subr.mxu0 0.0
    %1116 = vmatpush1.msra.mxu0 %v1090
    %1117 = vmatprep.subr.mxu0 0.0
    %1118 = vmatpush1.msra.mxu0 0.0
    %1119 = vmatprep.subr.mxu0 0.0
    %1120 = vmatpush1.msra.mxu0 0.0
    %1121 = vmatprep.subr.mxu0 0.0
    %1122 = vmatpush1.msra.mxu0 0.0
    %1123 = vmatprep.subr.mxu0 0.0
    %1124 = vmatpush1.msra.mxu0 0.0
    %1125 = vmatprep.subr.mxu0 0.0
    %1126 = vmatpush1.msra.mxu0 0.0
    %1127 = vmatprep.subr.mxu0 0.0
    %1128 = vmatpush1.msra.mxu0 0.0
    %1129 = vmatprep.subr.mxu0 0.0
    %1130 = vmatpush1.msra.mxu0 0.0
    %1131 = vmatprep.subr.mxu0 0.0
    %1132 = vmatpush1.msra.mxu0 0.0
    %1133 = vmatprep.subr.mxu0 0.0
    %1134 = vmatpush1.msra.mxu0 0.0
    %1135 = vmatprep.subr.mxu0 0.0
    %1136 = vmatpush1.msra.mxu0 0.0
    %1137 = vmatprep.subr.mxu0 0.0
    %1138 = vmatpush1.msra.mxu0 0.0
    %1139 = vmatprep.subr.mxu0 0.0
    %1140 = vmatpush1.msra.mxu0 0.0
    %1141 = vmatprep.subr.mxu0 0.0
    %1142 = vmatpush1.msra.mxu0 0.0
    %1143 = vmatprep.subr.mxu0 0.0
    %1144 = vmatpush1.msra.mxu0 0.0
    %1145 = vmatprep.subr.mxu0 0.0
    %1146 = vmatpush1.msra.mxu0 0.0
    %1147 = vmatprep.subr.mxu0 0.0
    %1148 = vmatpush1.msra.mxu0 0.0
    %1149 = vmatprep.subr.mxu0 0.0
    %1150 = vmatpush1.msra.mxu0 0.0
    %1151 = vmatprep.subr.mxu0 0.0
    %1152 = vmatpush1.msra.mxu0 0.0
    %1153 = vmatprep.subr.mxu0 0.0
    %1154 = vmatpush1.msra.mxu0 0.0
    %1155 = vmatprep.subr.mxu0 0.0
    %1156 = vmatpush1.msra.mxu0 0.0
    %1157 = vmatprep.subr.mxu0 0.0
    %1158 = vmatpush1.msra.mxu0 0.0
    %1159 = vmatprep.subr.mxu0 0.0
    %1160 = vmatpush1.msra.mxu0 0.0
    %1161 = vmatprep.subr.mxu0 0.0
    %1162 = vmatpush1.msra.mxu0 0.0
    %1163 = vmatprep.subr.mxu0 0.0
    %1164 = vmatpush1.msra.mxu0 0.0
    %1165 = vmatprep.subr.mxu0 0.0
    %1166 = vmatpush1.msra.mxu0 0.0
    %1167 = vmatprep.subr.mxu0 0.0
    %1168 = vmatpush1.msra.mxu0 0.0
    %1169 = vmatprep.subr.mxu0 0.0
    %1170 = vmatpush1.msra.mxu0 0.0
    %1171 = vmatprep.subr.mxu0 0.0
    %1172 = vmatpush1.msra.mxu0 0.0
    %1173 = vmatprep.subr.mxu0 0.0
    %1174 = vmatpush1.msra.mxu0 0.0
    %1175 = vmatprep.mubr.f32.mxu0 0.0
    %1176 = vmatmul.mubr.f32.gmra.mrb[0].mxu0 %v1100
    %v1177 = vpop.f32.mrb[0].mxu0
    %v1178 = vadd.f32 %v1096, %v1177
    %v1179 = vpop.f32.mrb[0].mxu0
    %1180 = vmatprep.mubr.f32.mxu0 0.0
    %1181 = vmatmul.mubr.f32.gmra.mrb[0].mxu0 %v1103
    %v1182 = vpop.f32.mrb[0].mxu0
    %v1183 = vadd.f32 %v1096, %v1182
    %v1184 = vpop.f32.mrb[0].mxu0
    %1185 = vmatprep.mubr.f32.mxu0 0.0
    %1186 = vmatmul.mubr.f32.gmra.mrb[0].mxu0 %v1106
    %v1187 = vpop.f32.mrb[0].mxu0
    %v1188 = vadd.f32 %v1096, %v1187
    %v1189 = vpop.f32.mrb[0].mxu0
    %1190 = vmatprep.mubr.f32.mxu0 0.0
    %1191 = vmatmul.mubr.f32.gmra.mrb[0].mxu0 %v1109
    %v1192 = vpop.f32.mrb[0].mxu0
    %v1193 = vadd.f32 %v1096, %v1192
    %v1194 = vpop.f32.mrb[0].mxu0
    %1195 = vdwg.mxu0
    %v1196 = vmax.f32 %v1178, 0.0
    %v1197 = vmax.f32 %v1183, 0.0
    %v1198 = vmax.f32 %v1188, 0.0
    %v1199 = vmax.f32 %v1193, 0.0
    %v1200 = vld [vmem:[%s11] sm:$0xff]
    %v1201 = vld [vmem:[%s11 + $0x8] sm:$0xff]
    %v1202 = vld [vmem:[%s11 + $0x10] sm:$0xff]
    %v1203 = vld [vmem:[%s11 + $0x18] sm:$0xff]
    %v1204 = vld [vmem:[%s11 + $0x20] sm:$0xff]
    %v1205 = vld [vmem:[%s11 + $0x28] sm:$0xff]
    %vm1206 = vcmask 392192
    %v1208 = vsel %vm1206, %v1196, 0
    %v1211 = vsel %vm1206, %v1197, 0
    %v1214 = vsel %vm1206, %v1198, 0
    %v1217 = vsel %vm1206, %v1199, 0
    %1219 = vmatprep.subr.mxu0 0.0
    %1220 = vmatpush1.msra.mxu0 %v1200
    %1221 = vmatprep.subr.mxu0 0.0
    %1222 = vmatpush1.msra.mxu0 %v1201
    %1223 = vmatprep.subr.mxu0 0.0
    %1224 = vmatpush1.msra.mxu0 %v1202
    %1225 = vmatprep.subr.mxu0 0.0
    %1226 = vmatpush1.msra.mxu0 %v1203
    %1227 = vmatprep.subr.mxu0 0.0
    %1228 = vmatpush1.msra.mxu0 %v1204
    %1229 = vmatprep.subr.mxu0 0.0
    %1230 = vmatpush1.msra.mxu0 %v1205
    %1231 = vmatprep.subr.mxu0 0.0
    %1232 = vmatpush1.msra.mxu0 0.0
    %1233 = vmatprep.subr.mxu0 0.0
    %1234 = vmatpush1.msra.mxu0 0.0
    %1235 = vmatprep.subr.mxu0 0.0
    %1236 = vmatpush1.msra.mxu0 0.0
    %1237 = vmatprep.subr.mxu0 0.0
    %1238 = vmatpush1.msra.mxu0 0.0
    %1239 = vmatprep.subr.mxu0 0.0
    %1240 = vmatpush1.msra.mxu0 0.0
    %1241 = vmatprep.subr.mxu0 0.0
    %1242 = vmatpush1.msra.mxu0 0.0
    %1243 = vmatprep.subr.mxu0 0.0
    %1244 = vmatpush1.msra.mxu0 0.0
    %1245 = vmatprep.subr.mxu0 0.0
    %1246 = vmatpush1.msra.mxu0 0.0
    %1247 = vmatprep.subr.mxu0 0.0
    %1248 = vmatpush1.msra.mxu0 0.0
    %1249 = vmatprep.subr.mxu0 0.0
    %1250 = vmatpush1.msra.mxu0 0.0
    %1251 = vmatprep.subr.mxu0 0.0
    %1252 = vmatpush1.msra.mxu0 0.0
    %1253 = vmatprep.subr.mxu0 0.0
    %1254 = vmatpush1.msra.mxu0 0.0
    %1255 = vmatprep.subr.mxu0 0.0
    %1256 = vmatpush1.msra.mxu0 0.0
    %1257 = vmatprep.subr.mxu0 0.0
    %1258 = vmatpush1.msra.mxu0 0.0
    %1259 = vmatprep.subr.mxu0 0.0
    %1260 = vmatpush1.msra.mxu0 0.0
    %1261 = vmatprep.subr.mxu0 0.0
    %1262 = vmatpush1.msra.mxu0 0.0
    %1263 = vmatprep.subr.mxu0 0.0
    %1264 = vmatpush1.msra.mxu0 0.0
    %1265 = vmatprep.subr.mxu0 0.0
    %1266 = vmatpush1.msra.mxu0 0.0
    %1267 = vmatprep.subr.mxu0 0.0
    %1268 = vmatpush1.msra.mxu0 0.0
    %1269 = vmatprep.subr.mxu0 0.0
    %1270 = vmatpush1.msra.mxu0 0.0
    %1271 = vmatprep.subr.mxu0 0.0
    %1272 = vmatpush1.msra.mxu0 0.0
    %1273 = vmatprep.subr.mxu0 0.0
    %1274 = vmatpush1.msra.mxu0 0.0
    %1275 = vmatprep.subr.mxu0 0.0
    %1276 = vmatpush1.msra.mxu0 0.0
    %1277 = vmatprep.subr.mxu0 0.0
    %1278 = vmatpush1.msra.mxu0 0.0
    %1279 = vmatprep.subr.mxu0 0.0
    %1280 = vmatpush1.msra.mxu0 0.0
    %1281 = vmatprep.subr.mxu0 0.0
    %1282 = vmatpush1.msra.mxu0 0.0
    %1283 = vmatprep.mubr.f32.mxu0 0.0
    %1284 = vmatmul.mubr.f32.gmra.mrb[0].mxu0 %v1208
    %v1285 = vpop.f32.mrb[0].mxu0
    %v1286 = vadd.f32 0.0, %v1285
    %v1287 = vpop.f32.mrb[0].mxu0
    %1288 = vmatprep.mubr.f32.mxu0 0.0
    %1289 = vmatmul.mubr.f32.gmra.mrb[0].mxu0 %v1211
    %v1290 = vpop.f32.mrb[0].mxu0
    %v1291 = vadd.f32 0.0, %v1290
    %v1292 = vpop.f32.mrb[0].mxu0
    %1293 = vmatprep.mubr.f32.mxu0 0.0
    %1294 = vmatmul.mubr.f32.gmra.mrb[0].mxu0 %v1214
    %v1295 = vpop.f32.mrb[0].mxu0
    %v1296 = vadd.f32 0.0, %v1295
    %v1297 = vpop.f32.mrb[0].mxu0
    %1298 = vmatprep.mubr.f32.mxu0 0.0
    %1299 = vmatmul.mubr.f32.gmra.mrb[0].mxu0 %v1217
    %v1300 = vpop.f32.mrb[0].mxu0
    %v1301 = vadd.f32 0.0, %v1300
    %v1302 = vpop.f32.mrb[0].mxu0
    %1303 = vdwg.mxu0
    %v1304 = vld [vmem:[%s12] sm:$0xff]
    %v1305 = vld [vmem:[%s12 + $0x8] sm:$0xff]
    %v1306 = vld [vmem:[%s12 + $0x10] sm:$0xff]
    %v1307 = vld [vmem:[%s12 + $0x18] sm:$0xff]
    %v1308 = vld [vmem:[%s12 + $0x20] sm:$0xff]
    %v1309 = vld [vmem:[%s12 + $0x28] sm:$0xff]
    %1310 = vmatprep.subr.mxu0 0.0
    %1311 = vmatpush1.msra.mxu0 %v1304
    %1312 = vmatprep.subr.mxu0 0.0
    %1313 = vmatpush1.msra.mxu0 %v1305
    %1314 = vmatprep.subr.mxu0 0.0
    %1315 = vmatpush1.msra.mxu0 %v1306
    %1316 = vmatprep.subr.mxu0 0.0
    %1317 = vmatpush1.msra.mxu0 %v1307
    %1318 = vmatprep.subr.mxu0 0.0
    %1319 = vmatpush1.msra.mxu0 %v1308
    %1320 = vmatprep.subr.mxu0 0.0
    %1321 = vmatpush1.msra.mxu0 %v1309
    %1322 = vmatprep.subr.mxu0 0.0
    %1323 = vmatpush1.msra.mxu0 0.0
    %1324 = vmatprep.subr.mxu0 0.0
    %1325 = vmatpush1.msra.mxu0 0.0
    %1326 = vmatprep.subr.mxu0 0.0
    %1327 = vmatpush1.msra.mxu0 0.0
    %1328 = vmatprep.subr.mxu0 0.0
    %1329 = vmatpush1.msra.mxu0 0.0
    %1330 = vmatprep.subr.mxu0 0.0
    %1331 = vmatpush1.msra.mxu0 0.0
    %1332 = vmatprep.subr.mxu0 0.0
    %1333 = vmatpush1.msra.mxu0 0.0
    %1334 = vmatprep.subr.mxu0 0.0
    %1335 = vmatpush1.msra.mxu0 0.0
    %1336 = vmatprep.subr.mxu0 0.0
    %1337 = vmatpush1.msra.mxu0 0.0
    %1338 = vmatprep.subr.mxu0 0.0
    %1339 = vmatpush1.msra.mxu0 0.0
    %1340 = vmatprep.subr.mxu0 0.0
    %1341 = vmatpush1.msra.mxu0 0.0
    %1342 = vmatprep.subr.mxu0 0.0
    %1343 = vmatpush1.msra.mxu0 0.0
    %1344 = vmatprep.subr.mxu0 0.0
    %1345 = vmatpush1.msra.mxu0 0.0
    %1346 = vmatprep.subr.mxu0 0.0
    %1347 = vmatpush1.msra.mxu0 0.0
    %1348 = vmatprep.subr.mxu0 0.0
    %1349 = vmatpush1.msra.mxu0 0.0
    %1350 = vmatprep.subr.mxu0 0.0
    %1351 = vmatpush1.msra.mxu0 0.0
    %1352 = vmatprep.subr.mxu0 0.0
    %1353 = vmatpush1.msra.mxu0 0.0
    %1354 = vmatprep.subr.mxu0 0.0
    %1355 = vmatpush1.msra.mxu0 0.0
    %1356 = vmatprep.subr.mxu0 0.0
    %1357 = vmatpush1.msra.mxu0 0.0
    %1358 = vmatprep.subr.mxu0 0.0
    %1359 = vmatpush1.msra.mxu0 0.0
    %1360 = vmatprep.subr.mxu0 0.0
    %1361 = vmatpush1.msra.mxu0 0.0
    %1362 = vmatprep.subr.mxu0 0.0
    %1363 = vmatpush1.msra.mxu0 0.0
    %1364 = vmatprep.subr.mxu0 0.0
    %1365 = vmatpush1.msra.mxu0 0.0
    %1366 = vmatprep.subr.mxu0 0.0
    %1367 = vmatpush1.msra.mxu0 0.0
    %1368 = vmatprep.subr.mxu0 0.0
    %1369 = vmatpush1.msra.mxu0 0.0
    %1370 = vmatprep.subr.mxu0 0.0
    %1371 = vmatpush1.msra.mxu0 0.0
    %1372 = vmatprep.subr.mxu0 0.0
    %1373 = vmatpush1.msra.mxu0 0.0
    %1374 = vmatprep.mubr.f32.mxu0 0.0
    %1375 = vmatmul.mubr.f32.gmra.mrb[0].mxu0 %v1208
    %v1376 = vpop.f32.mrb[0].mxu0
    %v1377 = vadd.f32 0.0, %v1376
    %v1378 = vpop.f32.mrb[0].mxu0
    %1379 = vmatprep.mubr.f32.mxu0 0.0
    %1380 = vmatmul.mubr.f32.gmra.mrb[0].mxu0 %v1211
    %v1381 = vpop.f32.mrb[0].mxu0
    %v1382 = vadd.f32 0.0, %v1381
    %v1383 = vpop.f32.mrb[0].mxu0
    %1384 = vmatprep.mubr.f32.mxu0 0.0
    %1385 = vmatmul.mubr.f32.gmra.mrb[0].mxu0 %v1214
    %v1386 = vpop.f32.mrb[0].mxu0
    %v1387 = vadd.f32 0.0, %v1386
    %v1388 = vpop.f32.mrb[0].mxu0
    %1389 = vmatprep.mubr.f32.mxu0 0.0
    %1390 = vmatmul.mubr.f32.gmra.mrb[0].mxu0 %v1217
    %v1391 = vpop.f32.mrb[0].mxu0
    %v1392 = vadd.f32 0.0, %v1391
    %v1393 = vpop.f32.mrb[0].mxu0
    %1394 = vdwg.mxu0
    %v1395 = vmax.f32 %v1286, %v1377
    %v1396 = vmax.f32 %v1291, %v1382
    %v1397 = vmax.f32 %v1296, %v1387
    %v1398 = vmax.f32 %v1301, %v1392
    %v1403 = vrot.slane %v1395, 2
    %v1404 = vrot.slane %v1396, 2
    %v1405 = vsel %vm271, %v1403, %v1404
    %v1406 = vrot.slane %v1397, 2
    %v1407 = vsel %vm271, %v1404, %v1406
    %v1408 = vrot.slane %v1398, 2
    %v1409 = vsel %vm271, %v1406, %v1408
    %v1413 = vmax.f32 %v1395, %v1405
    %v1414 = vmax.f32 %v1396, %v1407
    %v1415 = vmax.f32 %v1397, %v1409
    %v1416 = vld [vmem:[%s13] sm:$0xf]
    %vm1417 = vcmask 187392
    %v1419 = vsel %vm1417, %v1416, 0
    %v1422 = vsel %vm71, %v1415, 0
    %1424 = vmatprep.subr.mxu0 0.0
    %1425 = vmatpush1.msra.mxu0 %v1413
    %1426 = vmatprep.subr.mxu0 0.0
    %1427 = vmatpush1.msra.mxu0 %v1414
    %1428 = vmatprep.subr.mxu0 0.0
    %1429 = vmatpush1.msra.mxu0 %v1422
    %1430 = vmatprep.subr.mxu0 0.0
    %1431 = vmatpush1.msra.mxu0 0.0
    %1432 = vmatprep.subr.mxu0 0.0
    %1433 = vmatpush1.msra.mxu0 0.0
    %1434 = vmatprep.subr.mxu0 0.0
    %1435 = vmatpush1.msra.mxu0 0.0
    %1436 = vmatprep.subr.mxu0 0.0
    %1437 = vmatpush1.msra.mxu0 0.0
    %1438 = vmatprep.subr.mxu0 0.0
    %1439 = vmatpush1.msra.mxu0 0.0
    %1440 = vmatprep.subr.mxu0 0.0
    %1441 = vmatpush1.msra.mxu0 0.0
    %1442 = vmatprep.subr.mxu0 0.0
    %1443 = vmatpush1.msra.mxu0 0.0
    %1444 = vmatprep.subr.mxu0 0.0
    %1445 = vmatpush1.msra.mxu0 0.0
    %1446 = vmatprep.subr.mxu0 0.0
    %1447 = vmatpush1.msra.mxu0 0.0
    %1448 = vmatprep.subr.mxu0 0.0
    %1449 = vmatpush1.msra.mxu0 0.0
    %1450 = vmatprep.subr.mxu0 0.0
    %1451 = vmatpush1.msra.mxu0 0.0
    %1452 = vmatprep.subr.mxu0 0.0
    %1453 = vmatpush1.msra.mxu0 0.0
    %1454 = vmatprep.subr.mxu0 0.0
    %1455 = vmatpush1.msra.mxu0 0.0
    %1456 = vmatprep.subr.mxu0 0.0
    %1457 = vmatpush1.msra.mxu0 0.0
    %1458 = vmatprep.subr.mxu0 0.0
    %1459 = vmatpush1.msra.mxu0 0.0
    %1460 = vmatprep.subr.mxu0 0.0
    %1461 = vmatpush1.msra.mxu0 0.0
    %1462 = vmatprep.subr.mxu0 0.0
    %1463 = vmatpush1.msra.mxu0 0.0
    %1464 = vmatprep.subr.mxu0 0.0
    %1465 = vmatpush1.msra.mxu0 0.0
    %1466 = vmatprep.subr.mxu0 0.0
    %1467 = vmatpush1.msra.mxu0 0.0
    %1468 = vmatprep.subr.mxu0 0.0
    %1469 = vmatpush1.msra.mxu0 0.0
    %1470 = vmatprep.subr.mxu0 0.0
    %1471 = vmatpush1.msra.mxu0 0.0
    %1472 = vmatprep.subr.mxu0 0.0
    %1473 = vmatpush1.msra.mxu0 0.0
    %1474 = vmatprep.subr.mxu0 0.0
    %1475 = vmatpush1.msra.mxu0 0.0
    %1476 = vmatprep.subr.mxu0 0.0
    %1477 = vmatpush1.msra.mxu0 0.0
    %1478 = vmatprep.subr.mxu0 0.0
    %1479 = vmatpush1.msra.mxu0 0.0
    %1480 = vmatprep.subr.mxu0 0.0
    %1481 = vmatpush1.msra.mxu0 0.0
    %1482 = vmatprep.subr.mxu0 0.0
    %1483 = vmatpush1.msra.mxu0 0.0
    %1484 = vmatprep.subr.mxu0 0.0
    %1485 = vmatpush1.msra.mxu0 0.0
    %1486 = vmatprep.subr.mxu0 0.0
    %1487 = vmatpush1.msra.mxu0 0.0
    %1488 = vmatprep.mubr.f32.mxu0 0.0
    %1489 = vmatmul.mubr.f32.gmra.mrb[0].mxu0 %v1419
    %v1490 = vpop.f32.mrb[0].mxu0
    %v1491 = vadd.f32 0.0, %v1490
    %v1492 = vpop.f32.mrb[0].mxu0
    %1493 = vdwg.mxu0
    %v1494 = vld [vmem:[%s15] sm:$0x1]
    %v1495 = vld [vmem:[%s14] sm:$0xff]
    %v1496 = vld [vmem:[%s14 + $0x8] sm:$0xff]
    %vm1497 = vcmask 130048
    %v1499 = vsel %vm1497, %v1491, 0
    %1501 = vmatprep.subr.mxu0 0.0
    %1502 = vmatpush1.msra.mxu0 %v1495
    %1503 = vmatprep.subr.mxu0 0.0
    %1504 = vmatpush1.msra.mxu0 %v1496
    %1505 = vmatprep.subr.mxu0 0.0
    %1506 = vmatpush1.msra.mxu0 0.0
    %1507 = vmatprep.subr.mxu0 0.0
    %1508 = vmatpush1.msra.mxu0 0.0
    %1509 = vmatprep.subr.mxu0 0.0
    %1510 = vmatpush1.msra.mxu0 0.0
    %1511 = vmatprep.subr.mxu0 0.0
    %1512 = vmatpush1.msra.mxu0 0.0
    %1513 = vmatprep.subr.mxu0 0.0
    %1514 = vmatpush1.msra.mxu0 0.0
    %1515 = vmatprep.subr.mxu0 0.0
    %1516 = vmatpush1.msra.mxu0 0.0
    %1517 = vmatprep.subr.mxu0 0.0
    %1518 = vmatpush1.msra.mxu0 0.0
    %1519 = vmatprep.subr.mxu0 0.0
    %1520 = vmatpush1.msra.mxu0 0.0
    %1521 = vmatprep.subr.mxu0 0.0
    %1522 = vmatpush1.msra.mxu0 0.0
    %1523 = vmatprep.subr.mxu0 0.0
    %1524 = vmatpush1.msra.mxu0 0.0
    %1525 = vmatprep.subr.mxu0 0.0
    %1526 = vmatpush1.msra.mxu0 0.0
    %1527 = vmatprep.subr.mxu0 0.0
    %1528 = vmatpush1.msra.mxu0 0.0
    %1529 = vmatprep.subr.mxu0 0.0
    %1530 = vmatpush1.msra.mxu0 0.0
    %1531 = vmatprep.subr.mxu0 0.0
    %1532 = vmatpush1.msra.mxu0 0.0
    %1533 = vmatprep.subr.mxu0 0.0
    %1534 = vmatpush1.msra.mxu0 0.0
    %1535 = vmatprep.subr.mxu0 0.0
    %1536 = vmatpush1.msra.mxu0 0.0
    %1537 = vmatprep.subr.mxu0 0.0
    %1538 = vmatpush1.msra.mxu0 0.0
    %1539 = vmatprep.subr.mxu0 0.0
    %1540 = vmatpush1.msra.mxu0 0.0
    %1541 = vmatprep.subr.mxu0 0.0
    %1542 = vmatpush1.msra.mxu0 0.0
    %1543 = vmatprep.subr.mxu0 0.0
    %1544 = vmatpush1.msra.mxu0 0.0
    %1545 = vmatprep.subr.mxu0 0.0
    %1546 = vmatpush1.msra.mxu0 0.0
    %1547 = vmatprep.subr.mxu0 0.0
    %1548 = vmatpush1.msra.mxu0 0.0
    %1549 = vmatprep.subr.mxu0 0.0
    %1550 = vmatpush1.msra.mxu0 0.0
    %1551 = vmatprep.subr.mxu0 0.0
    %1552 = vmatpush1.msra.mxu0 0.0
    %1553 = vmatprep.subr.mxu0 0.0
    %1554 = vmatpush1.msra.mxu0 0.0
    %1555 = vmatprep.subr.mxu0 0.0
    %1556 = vmatpush1.msra.mxu0 0.0
    %1557 = vmatprep.subr.mxu0 0.0
    %1558 = vmatpush1.msra.mxu0 0.0
    %1559 = vmatprep.subr.mxu0 0.0
    %1560 = vmatpush1.msra.mxu0 0.0
    %1561 = vmatprep.subr.mxu0 0.0
    %1562 = vmatpush1.msra.mxu0 0.0
    %1563 = vmatprep.subr.mxu0 0.0
    %1564 = vmatpush1.msra.mxu0 0.0
    %1565 = vmatprep.mubr.f32.mxu0 0.0
    %1566 = vmatmul.mubr.f32.gmra.mrb[0].mxu0 %v1499
    %v1567 = vpop.f32.mrb[0].mxu0
    %v1568 = vadd.f32 0.0, %v1567
    %v1569 = vpop.f32.mrb[0].mxu0
    %1570 = vdwg.mxu0
    %v1572 = vlaneseq
    %v1573 = vshrl.u32 %v1572, 7
    %v1574 = vsub.s32 0, %v1573
    %v1575 = vrot.slane %v1494, %v1574
    %v1577 = vadd.f32 %v1575, %v1568
    %s1578 = scalar_lea.vmem %s14, 16
    %v1579 = vld [vmem:[%s1578] sm:$0xff]
    %v1580 = vld [vmem:[%s1578 + $0x8] sm:$0xff]
    %v1581 = vrot.slane %v1491, 2
    %v1582 = vsel %vm1497, %v1581, 0
    %1584 = vmatprep.subr.mxu0 0.0
    %1585 = vmatpush1.msra.mxu0 %v1579
    %1586 = vmatprep.subr.mxu0 0.0
    %1587 = vmatpush1.msra.mxu0 %v1580
    %1588 = vmatprep.subr.mxu0 0.0
    %1589 = vmatpush1.msra.mxu0 0.0
    %1590 = vmatprep.subr.mxu0 0.0
    %1591 = vmatpush1.msra.mxu0 0.0
    %1592 = vmatprep.subr.mxu0 0.0
    %1593 = vmatpush1.msra.mxu0 0.0
    %1594 = vmatprep.subr.mxu0 0.0
    %1595 = vmatpush1.msra.mxu0 0.0
    %1596 = vmatprep.subr.mxu0 0.0
    %1597 = vmatpush1.msra.mxu0 0.0
    %1598 = vmatprep.subr.mxu0 0.0
    %1599 = vmatpush1.msra.mxu0 0.0
    %1600 = vmatprep.subr.mxu0 0.0
    %1601 = vmatpush1.msra.mxu0 0.0
    %1602 = vmatprep.subr.mxu0 0.0
    %1603 = vmatpush1.msra.mxu0 0.0
    %1604 = vmatprep.subr.mxu0 0.0
    %1605 = vmatpush1.msra.mxu0 0.0
    %1606 = vmatprep.subr.mxu0 0.0
    %1607 = vmatpush1.msra.mxu0 0.0
    %1608 = vmatprep.subr.mxu0 0.0
    %1609 = vmatpush1.msra.mxu0 0.0
    %1610 = vmatprep.subr.mxu0 0.0
    %1611 = vmatpush1.msra.mxu0 0.0
    %1612 = vmatprep.subr.mxu0 0.0
    %1613 = vmatpush1.msra.mxu0 0.0
    %1614 = vmatprep.subr.mxu0 0.0
    %1615 = vmatpush1.msra.mxu0 0.0
    %1616 = vmatprep.subr.mxu0 0.0
    %1617 = vmatpush1.msra.mxu0 0.0
    %1618 = vmatprep.subr.mxu0 0.0
    %1619 = vmatpush1.msra.mxu0 0.0
    %1620 = vmatprep.subr.mxu0 0.0
    %1621 = vmatpush1.msra.mxu0 0.0
    %1622 = vmatprep.subr.mxu0 0.0
    %1623 = vmatpush1.msra.mxu0 0.0
    %1624 = vmatprep.subr.mxu0 0.0
    %1625 = vmatpush1.msra.mxu0 0.0
    %1626 = vmatprep.subr.mxu0 0.0
    %1627 = vmatpush1.msra.mxu0 0.0
    %1628 = vmatprep.subr.mxu0 0.0
    %1629 = vmatpush1.msra.mxu0 0.0
    %1630 = vmatprep.subr.mxu0 0.0
    %1631 = vmatpush1.msra.mxu0 0.0
    %1632 = vmatprep.subr.mxu0 0.0
    %1633 = vmatpush1.msra.mxu0 0.0
    %1634 = vmatprep.subr.mxu0 0.0
    %1635 = vmatpush1.msra.mxu0 0.0
    %1636 = vmatprep.subr.mxu0 0.0
    %1637 = vmatpush1.msra.mxu0 0.0
    %1638 = vmatprep.subr.mxu0 0.0
    %1639 = vmatpush1.msra.mxu0 0.0
    %1640 = vmatprep.subr.mxu0 0.0
    %1641 = vmatpush1.msra.mxu0 0.0
    %1642 = vmatprep.subr.mxu0 0.0
    %1643 = vmatpush1.msra.mxu0 0.0
    %1644 = vmatprep.subr.mxu0 0.0
    %1645 = vmatpush1.msra.mxu0 0.0
    %1646 = vmatprep.subr.mxu0 0.0
    %1647 = vmatpush1.msra.mxu0 0.0
    %1648 = vmatprep.mubr.f32.mxu0 0.0
    %1649 = vmatmul.mubr.f32.gmra.mrb[0].mxu0 %v1582
    %v1650 = vpop.f32.mrb[0].mxu0
    %v1651 = vadd.f32 0.0, %v1650
    %v1652 = vpop.f32.mrb[0].mxu0
    %1653 = vdwg.mxu0
    %v1654 = vadd.f32 %v1577, %v1651
    %1655 = vst [vmem:[#allocation2] sm:$0x3] %v1654
    // Predicated region
    $region66: #{cnn2_forward.1} parent=1 // pred_check
      _
    $region67: #{cnn2_forward.1} parent=1 // pred_check_branch
      %1657 = sbr.rel (0) target = $region69
    $region68: #{cnn2_forward.1} parent=1 // pred_region
      %s1659 = ssub.s32 32, 32
      %1660 = vsyncadd [#allocation3], %s1659
      %s1662 = sshll.u32 [#allocation2], 4
      %s1663 = int_to_ptr.vmem [resolvable:$true] %s1662
      %1665 = dma.vmem_to_hbm [thread:$0]  %s1663, 32, %s16, [#allocation3]
    $region69: #{cnn2_forward.1} parent=1 // pred_fallthru
      _
    // Predicated region
    $region70: #{cnn2_forward.1} parent=1 // pred_check
      _
    $region71: #{cnn2_forward.1} parent=1 // pred_check_branch
      %1667 = sbr.rel (0) target = $region73
    $region72: #{cnn2_forward.1} parent=1 // pred_region
      %1668 = dma.done [#allocation3], 32
    $region73: #{cnn2_forward.1} parent=1 // pred_fallthru
      _
    %1669 = vsyncpa [#allocation3], 1

</llo_original>
